<compile_context>
chip_gen: v7x
topology: tpu7x:2x2x1
jax: 0.10.0
libtpu: 0.0.40
codegen_flags: <defaults>
</compile_context>

<pallas_src>
import jax
import jax.numpy as jnp
from jax import lax
from jax.experimental import pallas as pl
from jax.experimental.pallas import tpu as pltpu

INPUT_SIZE = 62
HIDDEN_SIZE = 64
OUTPUT_SIZE = 7

_LANE = 128                 # TPU lane width
_HP = _LANE                 # padded per-gate / hidden width (64 -> 128)
_OP = _LANE                 # padded output width             (7 -> 128)
_G = 4 * _HP                # packed gate width (i|f|g|o, each 128 lanes)


def _lstm_kernel(xw_ref, whh_ref, wfc_ref, bfc_ref, out_ref, h_ref, c_ref):
    """xw_ref: (T_CHUNK, B_TILE, _G) f32  -- precomputed x@W_ih^T + b, time-major
    whh_ref: (_HP, _G) bf16              -- packed recurrent weight
    wfc_ref: (_HP, _OP) f32; bfc_ref: (1, _OP) f32
    out_ref: (B_TILE, _OP) f32
    h_ref/c_ref: (B_TILE, _HP) f32 VMEM scratch carried across T chunks."""
    t_idx = pl.program_id(1)

    @pl.when(t_idx == 0)
    def _():
        h_ref[...] = jnp.zeros_like(h_ref)
        c_ref[...] = jnp.zeros_like(c_ref)

    whh = whh_ref[...]                              # resident for the chunk
    t_chunk = xw_ref.shape[0]

    def step(t, carry):
        h, c = carry                                # (B_TILE, _HP) f32 each
        # Only the recurrent half lives on the serial chain: K = 128, bf16 MXU.
        gates = xw_ref[t] + jnp.dot(h.astype(jnp.bfloat16), whh,
                                    preferred_element_type=jnp.float32)
        # PyTorch gate order: i, f, g, o.  Each slice is a full 128-lane slab;
        # lanes 64:128 of every gate see only zero weights/bias, so c/h stay 0
        # there (g = tanh(0) = 0 with zero-initialized c).
        i_g = jax.nn.sigmoid(gates[:, 0 * _HP:1 * _HP])
        f_g = jax.nn.sigmoid(gates[:, 1 * _HP:2 * _HP])
        g_g = jnp.tanh(gates[:, 2 * _HP:3 * _HP])
        o_g = jax.nn.sigmoid(gates[:, 3 * _HP:4 * _HP])
        c_new = f_g * c + i_g * g_g
        h_new = o_g * jnp.tanh(c_new)
        return h_new, c_new

    # Bounded unroll: keeps LLO scheduling visibility without vreg spill /
    # compile-time blowup at large T_CHUNK.
    unroll = (t_chunk if t_chunk <= 8 else
              8 if t_chunk % 8 == 0 else
              4 if t_chunk % 4 == 0 else 1)
    h_fin, c_fin = lax.fori_loop(0, t_chunk, step, (h_ref[...], c_ref[...]),
                                 unroll=unroll)
    h_ref[...] = h_fin
    c_ref[...] = c_fin

    @pl.when(t_idx == pl.num_programs(1) - 1)
    def _():
        logits = (jnp.dot(h_fin, wfc_ref[...],
                          preferred_element_type=jnp.float32) + bfc_ref[...])
        out_ref[...] = jax.nn.sigmoid(logits)       # lane-dense (B_TILE, 128)


def _pack_params(params):
    """One-time packing into lane-padded, fused layouts (outside the kernel)."""
    H, D, O = HIDDEN_SIZE, INPUT_SIZE, OUTPUT_SIZE
    w_ih = params["w_ih"].astype(jnp.float32)                  # (4H, D)
    w_hh = params["w_hh"].astype(jnp.float32)                  # (4H, H)
    b = (params["b_ih"] + params["b_hh"]).astype(jnp.float32)  # (4H,)
    w_fc = params["w_fc"].astype(jnp.float32)                  # (O, H)
    b_fc = params["b_fc"].astype(jnp.float32)                  # (O,)

    w_ih_p = jnp.zeros((D, _G), jnp.float32)        # used only in wrapper matmul
    w_hh_p = jnp.zeros((_HP, _G), jnp.float32)      # recurrent weight -> bf16
    b_p = jnp.zeros((_G,), jnp.float32)
    for g in range(4):
        w_ih_p = w_ih_p.at[:, g * _HP:g * _HP + H].set(w_ih[g * H:(g + 1) * H, :].T)
        w_hh_p = w_hh_p.at[0:H, g * _HP:g * _HP + H].set(w_hh[g * H:(g + 1) * H, :].T)
        b_p = b_p.at[g * _HP:g * _HP + H].set(b[g * H:(g + 1) * H])

    w_fc_p = jnp.zeros((_HP, _OP), jnp.float32).at[0:H, 0:O].set(w_fc.T)
    b_fc_p = jnp.zeros((1, _OP), jnp.float32).at[0, 0:O].set(b_fc)
    return w_ih_p, b_p, w_hh_p.astype(jnp.bfloat16), w_fc_p, b_fc_p


def lstm_model_forward(x, params):
    """x: (B, T, INPUT_SIZE) float32 -> (B, OUTPUT_SIZE) float32."""
    B, T, D = x.shape
    assert D == INPUT_SIZE
    x = x.astype(jnp.float32)

    w_ih_p, b_p, whh_bf16, wfc_p, bfc_p = _pack_params(params)

    # Batch: pad to a multiple of 8 sublanes; tile for the "parallel" grid axis.
    b_tile = 8 * max(1, min((B + 7) // 8, 16))      # <= 128 rows per tile
    b_pad = ((B + b_tile - 1) // b_tile) * b_tile
    x_p = jnp.pad(x, ((0, b_pad - B), (0, 0), (0, 0)))

    # Input projection + fused bias for the WHOLE sequence as one big matmul,
    # produced directly in time-major layout: (T, B_pad, 4*128).
    xw = jnp.einsum("btd,dg->tbg", x_p, w_ih_p) + b_p

    # Time chunking: largest divisor of T that is <= 64.
    # TODO(synk): for huge prime T, add in-kernel tail masking instead of
    # falling back to tiny chunks.
    t_chunk = 1
    for cand in range(min(T, 64), 0, -1):
        if T % cand == 0:
            t_chunk = cand
            break
    n_t = T // t_chunk
    n_b = b_pad // b_tile

    out_pad = pl.pallas_call(
        _lstm_kernel,
        out_shape=jax.ShapeDtypeStruct((b_pad, _OP), jnp.float32),
        grid_spec=pltpu.PrefetchScalarGridSpec(
            num_scalar_prefetch=0,
            grid=(n_b, n_t),
            in_specs=[
                pl.BlockSpec((t_chunk, b_tile, _G), lambda b, t: (t, b, 0)),
                pl.BlockSpec((_HP, _G), lambda b, t: (0, 0)),
                pl.BlockSpec((_HP, _OP), lambda b, t: (0, 0)),
                pl.BlockSpec((1, _OP), lambda b, t: (0, 0)),
            ],
            out_specs=pl.BlockSpec((b_tile, _OP), lambda b, t: (b, 0)),
            scratch_shapes=[pltpu.VMEM((b_tile, _HP), jnp.float32),
                            pltpu.VMEM((b_tile, _HP), jnp.float32)],
        ),
        compiler_params=pltpu.CompilerParams(
            dimension_semantics=("parallel", "arbitrary")),
    )(xw, whh_bf16, wfc_p, bfc_p)
    return out_pad[:B, :OUTPUT_SIZE]


def init_params(key):
    """Deterministic init mimicking PyTorch's U(-1/sqrt(H), 1/sqrt(H))."""
    H, D, O = HIDDEN_SIZE, INPUT_SIZE, OUTPUT_SIZE
    bound = 1.0 / jnp.sqrt(jnp.float32(H))
    ks = jax.random.split(key, 6)
    u = lambda k, shape: jax.random.uniform(
        k, shape, jnp.float32, minval=-bound, maxval=bound)
    return {
        "w_ih": u(ks[0], (4 * H, D)),
        "w_hh": u(ks[1], (4 * H, H)),
        "b_ih": u(ks[2], (4 * H,)),
        "b_hh": u(ks[3], (4 * H,)),
        "w_fc": u(ks[4], (O, H)),
        "b_fc": u(ks[5], (O,)),
    }


def _reference_forward(x, params):
    """Pure-JAX f32 reference of the same LSTM forward (sanity check)."""
    B, T, D = x.shape
    H = HIDDEN_SIZE
    h = jnp.zeros((B, H), jnp.float32)
    c = jnp.zeros((B, H), jnp.float32)
    for t in range(T):
        gates = (x[:, t, :] @ params["w_ih"].T + h @ params["w_hh"].T
                 + params["b_ih"] + params["b_hh"])
        i_g = jax.nn.sigmoid(gates[:, 0 * H:1 * H])
        f_g = jax.nn.sigmoid(gates[:, 1 * H:2 * H])
        g_g = jnp.tanh(gates[:, 2 * H:3 * H])
        o_g = jax.nn.sigmoid(gates[:, 3 * H:4 * H])
        c = f_g * c + i_g * g_g
        h = o_g * jnp.tanh(c)
    return jax.nn.sigmoid(h @ params["w_fc"].T + params["b_fc"])


if __name__ == "__main__":
    key = jax.random.PRNGKey(0)
    kx, kp = jax.random.split(key)

    B, T = 2, 8
    x = jax.random.normal(kx, (B, T, INPUT_SIZE), jnp.float32)
    params = init_params(kp)

    out = lstm_model_forward(x, params)
    out = jax.block_until_ready(out)

    ref = _reference_forward(x, params)
    assert out.shape == (B, OUTPUT_SIZE)
    # Recurrent matmul runs in bf16 (f32 accumulation) -> small, bounded drift.
    assert jnp.allclose(out, ref, atol=2e-2, rtol=2e-2)

    print("KERNEL_OK")
</pallas_src>

<mosaic_0001>
module attributes {stable_mosaic.version = 11 : i64} {
  func.func @_lstm_kernel(%arg0: i32, %arg1: i32, %arg2: memref<8x8x512xf32, #tpu.memory_space<vmem>>, %arg3: memref<128x512xbf16, #tpu.memory_space<vmem>>, %arg4: memref<128x128xf32, #tpu.memory_space<vmem>>, %arg5: memref<1x128xf32, #tpu.memory_space<vmem>>, %arg6: memref<8x128xf32, #tpu.memory_space<vmem>>, %arg7: memref<8x128xf32, #tpu.memory_space<vmem>>, %arg8: memref<8x128xf32, #tpu.memory_space<vmem>>) attributes {dimension_semantics = [#tpu.dimension_semantics<parallel>, #tpu.dimension_semantics<arbitrary>], iteration_bounds = array<i64: 1, 1>, scalar_prefetch = 0 : i64, scratch_operands = 2 : i64, tpu.core_type = #tpu.core_type<tc>, window_params = [{transform_indices = @transform_0, window_bounds = array<i64: 8, 8, 512>}, {pipeline_mode = #tpu.pipeline_mode<synchronous>, transform_indices = @transform_1, window_bounds = array<i64: 128, 512>}, {pipeline_mode = #tpu.pipeline_mode<synchronous>, transform_indices = @transform_2, window_bounds = array<i64: 128, 128>}, {pipeline_mode = #tpu.pipeline_mode<synchronous>, transform_indices = @transform_3, window_bounds = array<i64: 1, 128>}, {transform_indices = @transform_4, window_bounds = array<i64: 8, 128>}]} {
    %c0_i32 = arith.constant 0 : i32
    %0 = arith.cmpi eq, %arg1, %c0_i32 : i32
    %1 = arith.extui %0 : i1 to i32
    %c0_i32_0 = arith.constant 0 : i32
    %2 = arith.cmpi ne, %1, %c0_i32_0 : i32
    scf.if %2 {
      %cst_60 = arith.constant 0.000000e+00 : f32
      %259 = vector.broadcast %cst_60 : f32 to vector<8x128xf32>
      %c0_61 = arith.constant 0 : index
      %c0_62 = arith.constant 0 : index
      %260 = vector.load %arg7[%c0_61, %c0_62] : memref<8x128xf32, #tpu.memory_space<vmem>>, vector<8x128xf32>
      tpu.vector_store %arg7[%c0_61, %c0_62], %259 {strides = array<i32>} : memref<8x128xf32, #tpu.memory_space<vmem>>, vector<8x128xf32>,
      %cst_63 = arith.constant 0.000000e+00 : f32
      %261 = vector.broadcast %cst_63 : f32 to vector<8x128xf32>
      %c0_64 = arith.constant 0 : index
      %c0_65 = arith.constant 0 : index
      %262 = vector.load %arg8[%c0_64, %c0_65] : memref<8x128xf32, #tpu.memory_space<vmem>>, vector<8x128xf32>
      tpu.vector_store %arg8[%c0_64, %c0_65], %261 {strides = array<i32>} : memref<8x128xf32, #tpu.memory_space<vmem>>, vector<8x128xf32>,
    } else {
    }
    %c0 = arith.constant 0 : index
    %c0_1 = arith.constant 0 : index
    %3 = vector.load %arg3[%c0, %c0_1] : memref<128x512xbf16, #tpu.memory_space<vmem>>, vector<128x512xbf16>
    %c0_2 = arith.constant 0 : index
    %c0_3 = arith.constant 0 : index
    %4 = vector.load %arg7[%c0_2, %c0_3] : memref<8x128xf32, #tpu.memory_space<vmem>>, vector<8x128xf32>
    %c0_4 = arith.constant 0 : index
    %c0_5 = arith.constant 0 : index
    %5 = vector.load %arg8[%c0_4, %c0_5] : memref<8x128xf32, #tpu.memory_space<vmem>>, vector<8x128xf32>
    %c0_i32_6 = arith.constant 0 : i32
    %6 = arith.index_cast %c0_i32_6 : i32 to index
    %c0_7 = arith.constant 0 : index
    %c0_8 = arith.constant 0 : index
    %7 = vector.load %arg2[%6, %c0_7, %c0_8] : memref<8x8x512xf32, #tpu.memory_space<vmem>>, vector<1x8x512xf32>
    %8 = vector.shape_cast %7 : vector<1x8x512xf32> to vector<8x512xf32>
    %9 = arith.truncf %4 : vector<8x128xf32> to vector<8x128xbf16>
    %cst = arith.constant dense<0.000000e+00> : vector<8x512xf32>
    %10 = tpu.matmul %9, %3, %cst {dimension_numbers = #tpu.dot_dimension_numbers<[1], [0], [0], [1], [0, 0, 1, 1], [], []>} : vector<8x128xbf16>, vector<128x512xbf16>, vector<8x512xf32> -> vector<8x512xf32>
    %11 = arith.addf %8, %10 : vector<8x512xf32>
    %12 = vector.extract_strided_slice %11 {offsets = [0, 0], sizes = [8, 128], strides = [1, 1]} : vector<8x512xf32> to vector<8x128xf32>
    %13 = arith.negf %12 : vector<8x128xf32>
    %14 = math.exp %13 : vector<8x128xf32>
    %cst_9 = arith.constant 1.000000e+00 : f32
    %15 = vector.broadcast %cst_9 : f32 to vector<8x128xf32>
    %16 = arith.addf %15, %14 : vector<8x128xf32>
    %17 = arith.divf %15, %16 : vector<8x128xf32>
    %18 = vector.extract_strided_slice %11 {offsets = [0, 128], sizes = [8, 128], strides = [1, 1]} : vector<8x512xf32> to vector<8x128xf32>
    %19 = arith.negf %18 : vector<8x128xf32>
    %20 = math.exp %19 : vector<8x128xf32>
    %cst_10 = arith.constant 1.000000e+00 : f32
    %21 = vector.broadcast %cst_10 : f32 to vector<8x128xf32>
    %22 = arith.addf %21, %20 : vector<8x128xf32>
    %23 = arith.divf %21, %22 : vector<8x128xf32>
    %24 = vector.extract_strided_slice %11 {offsets = [0, 256], sizes = [8, 128], strides = [1, 1]} : vector<8x512xf32> to vector<8x128xf32>
    %25 = math.tanh %24 : vector<8x128xf32>
    %26 = vector.extract_strided_slice %11 {offsets = [0, 384], sizes = [8, 128], strides = [1, 1]} : vector<8x512xf32> to vector<8x128xf32>
    %27 = arith.negf %26 : vector<8x128xf32>
    %28 = math.exp %27 : vector<8x128xf32>
    %cst_11 = arith.constant 1.000000e+00 : f32
    %29 = vector.broadcast %cst_11 : f32 to vector<8x128xf32>
    %30 = arith.addf %29, %28 : vector<8x128xf32>
    %31 = arith.divf %29, %30 : vector<8x128xf32>
    %32 = arith.mulf %23, %5 : vector<8x128xf32>
    %33 = arith.mulf %17, %25 : vector<8x128xf32>
    %34 = arith.addf %32, %33 : vector<8x128xf32>
    %35 = math.tanh %34 : vector<8x128xf32>
    %36 = arith.mulf %31, %35 : vector<8x128xf32>
    %c1_i32 = arith.constant 1 : i32
    %37 = arith.index_cast %c1_i32 : i32 to index
    %c0_12 = arith.constant 0 : index
    %c0_13 = arith.constant 0 : index
    %38 = vector.load %arg2[%37, %c0_12, %c0_13] : memref<8x8x512xf32, #tpu.memory_space<vmem>>, vector<1x8x512xf32>
    %39 = vector.shape_cast %38 : vector<1x8x512xf32> to vector<8x512xf32>
    %40 = arith.truncf %36 : vector<8x128xf32> to vector<8x128xbf16>
    %cst_14 = arith.constant dense<0.000000e+00> : vector<8x512xf32>
    %41 = tpu.matmul %40, %3, %cst_14 {dimension_numbers = #tpu.dot_dimension_numbers<[1], [0], [0], [1], [0, 0, 1, 1], [], []>} : vector<8x128xbf16>, vector<128x512xbf16>, vector<8x512xf32> -> vector<8x512xf32>
    %42 = arith.addf %39, %41 : vector<8x512xf32>
    %43 = vector.extract_strided_slice %42 {offsets = [0, 0], sizes = [8, 128], strides = [1, 1]} : vector<8x512xf32> to vector<8x128xf32>
    %44 = arith.negf %43 : vector<8x128xf32>
    %45 = math.exp %44 : vector<8x128xf32>
    %cst_15 = arith.constant 1.000000e+00 : f32
    %46 = vector.broadcast %cst_15 : f32 to vector<8x128xf32>
    %47 = arith.addf %46, %45 : vector<8x128xf32>
    %48 = arith.divf %46, %47 : vector<8x128xf32>
    %49 = vector.extract_strided_slice %42 {offsets = [0, 128], sizes = [8, 128], strides = [1, 1]} : vector<8x512xf32> to vector<8x128xf32>
    %50 = arith.negf %49 : vector<8x128xf32>
    %51 = math.exp %50 : vector<8x128xf32>
    %cst_16 = arith.constant 1.000000e+00 : f32
    %52 = vector.broadcast %cst_16 : f32 to vector<8x128xf32>
    %53 = arith.addf %52, %51 : vector<8x128xf32>
    %54 = arith.divf %52, %53 : vector<8x128xf32>
    %55 = vector.extract_strided_slice %42 {offsets = [0, 256], sizes = [8, 128], strides = [1, 1]} : vector<8x512xf32> to vector<8x128xf32>
    %56 = math.tanh %55 : vector<8x128xf32>
    %57 = vector.extract_strided_slice %42 {offsets = [0, 384], sizes = [8, 128], strides = [1, 1]} : vector<8x512xf32> to vector<8x128xf32>
    %58 = arith.negf %57 : vector<8x128xf32>
    %59 = math.exp %58 : vector<8x128xf32>
    %cst_17 = arith.constant 1.000000e+00 : f32
    %60 = vector.broadcast %cst_17 : f32 to vector<8x128xf32>
    %61 = arith.addf %60, %59 : vector<8x128xf32>
    %62 = arith.divf %60, %61 : vector<8x128xf32>
    %63 = arith.mulf %54, %34 : vector<8x128xf32>
    %64 = arith.mulf %48, %56 : vector<8x128xf32>
    %65 = arith.addf %63, %64 : vector<8x128xf32>
    %66 = math.tanh %65 : vector<8x128xf32>
    %67 = arith.mulf %62, %66 : vector<8x128xf32>
    %c2_i32 = arith.constant 2 : i32
    %68 = arith.index_cast %c2_i32 : i32 to index
    %c0_18 = arith.constant 0 : index
    %c0_19 = arith.constant 0 : index
    %69 = vector.load %arg2[%68, %c0_18, %c0_19] : memref<8x8x512xf32, #tpu.memory_space<vmem>>, vector<1x8x512xf32>
    %70 = vector.shape_cast %69 : vector<1x8x512xf32> to vector<8x512xf32>
    %71 = arith.truncf %67 : vector<8x128xf32> to vector<8x128xbf16>
    %cst_20 = arith.constant dense<0.000000e+00> : vector<8x512xf32>
    %72 = tpu.matmul %71, %3, %cst_20 {dimension_numbers = #tpu.dot_dimension_numbers<[1], [0], [0], [1], [0, 0, 1, 1], [], []>} : vector<8x128xbf16>, vector<128x512xbf16>, vector<8x512xf32> -> vector<8x512xf32>
    %73 = arith.addf %70, %72 : vector<8x512xf32>
    %74 = vector.extract_strided_slice %73 {offsets = [0, 0], sizes = [8, 128], strides = [1, 1]} : vector<8x512xf32> to vector<8x128xf32>
    %75 = arith.negf %74 : vector<8x128xf32>
    %76 = math.exp %75 : vector<8x128xf32>
    %cst_21 = arith.constant 1.000000e+00 : f32
    %77 = vector.broadcast %cst_21 : f32 to vector<8x128xf32>
    %78 = arith.addf %77, %76 : vector<8x128xf32>
    %79 = arith.divf %77, %78 : vector<8x128xf32>
    %80 = vector.extract_strided_slice %73 {offsets = [0, 128], sizes = [8, 128], strides = [1, 1]} : vector<8x512xf32> to vector<8x128xf32>
    %81 = arith.negf %80 : vector<8x128xf32>
    %82 = math.exp %81 : vector<8x128xf32>
    %cst_22 = arith.constant 1.000000e+00 : f32
    %83 = vector.broadcast %cst_22 : f32 to vector<8x128xf32>
    %84 = arith.addf %83, %82 : vector<8x128xf32>
    %85 = arith.divf %83, %84 : vector<8x128xf32>
    %86 = vector.extract_strided_slice %73 {offsets = [0, 256], sizes = [8, 128], strides = [1, 1]} : vector<8x512xf32> to vector<8x128xf32>
    %87 = math.tanh %86 : vector<8x128xf32>
    %88 = vector.extract_strided_slice %73 {offsets = [0, 384], sizes = [8, 128], strides = [1, 1]} : vector<8x512xf32> to vector<8x128xf32>
    %89 = arith.negf %88 : vector<8x128xf32>
    %90 = math.exp %89 : vector<8x128xf32>
    %cst_23 = arith.constant 1.000000e+00 : f32
    %91 = vector.broadcast %cst_23 : f32 to vector<8x128xf32>
    %92 = arith.addf %91, %90 : vector<8x128xf32>
    %93 = arith.divf %91, %92 : vector<8x128xf32>
    %94 = arith.mulf %85, %65 : vector<8x128xf32>
    %95 = arith.mulf %79, %87 : vector<8x128xf32>
    %96 = arith.addf %94, %95 : vector<8x128xf32>
    %97 = math.tanh %96 : vector<8x128xf32>
    %98 = arith.mulf %93, %97 : vector<8x128xf32>
    %c3_i32 = arith.constant 3 : i32
    %99 = arith.index_cast %c3_i32 : i32 to index
    %c0_24 = arith.constant 0 : index
    %c0_25 = arith.constant 0 : index
    %100 = vector.load %arg2[%99, %c0_24, %c0_25] : memref<8x8x512xf32, #tpu.memory_space<vmem>>, vector<1x8x512xf32>
    %101 = vector.shape_cast %100 : vector<1x8x512xf32> to vector<8x512xf32>
    %102 = arith.truncf %98 : vector<8x128xf32> to vector<8x128xbf16>
    %cst_26 = arith.constant dense<0.000000e+00> : vector<8x512xf32>
    %103 = tpu.matmul %102, %3, %cst_26 {dimension_numbers = #tpu.dot_dimension_numbers<[1], [0], [0], [1], [0, 0, 1, 1], [], []>} : vector<8x128xbf16>, vector<128x512xbf16>, vector<8x512xf32> -> vector<8x512xf32>
    %104 = arith.addf %101, %103 : vector<8x512xf32>
    %105 = vector.extract_strided_slice %104 {offsets = [0, 0], sizes = [8, 128], strides = [1, 1]} : vector<8x512xf32> to vector<8x128xf32>
    %106 = arith.negf %105 : vector<8x128xf32>
    %107 = math.exp %106 : vector<8x128xf32>
    %cst_27 = arith.constant 1.000000e+00 : f32
    %108 = vector.broadcast %cst_27 : f32 to vector<8x128xf32>
    %109 = arith.addf %108, %107 : vector<8x128xf32>
    %110 = arith.divf %108, %109 : vector<8x128xf32>
    %111 = vector.extract_strided_slice %104 {offsets = [0, 128], sizes = [8, 128], strides = [1, 1]} : vector<8x512xf32> to vector<8x128xf32>
    %112 = arith.negf %111 : vector<8x128xf32>
    %113 = math.exp %112 : vector<8x128xf32>
    %cst_28 = arith.constant 1.000000e+00 : f32
    %114 = vector.broadcast %cst_28 : f32 to vector<8x128xf32>
    %115 = arith.addf %114, %113 : vector<8x128xf32>
    %116 = arith.divf %114, %115 : vector<8x128xf32>
    %117 = vector.extract_strided_slice %104 {offsets = [0, 256], sizes = [8, 128], strides = [1, 1]} : vector<8x512xf32> to vector<8x128xf32>
    %118 = math.tanh %117 : vector<8x128xf32>
    %119 = vector.extract_strided_slice %104 {offsets = [0, 384], sizes = [8, 128], strides = [1, 1]} : vector<8x512xf32> to vector<8x128xf32>
    %120 = arith.negf %119 : vector<8x128xf32>
    %121 = math.exp %120 : vector<8x128xf32>
    %cst_29 = arith.constant 1.000000e+00 : f32
    %122 = vector.broadcast %cst_29 : f32 to vector<8x128xf32>
    %123 = arith.addf %122, %121 : vector<8x128xf32>
    %124 = arith.divf %122, %123 : vector<8x128xf32>
    %125 = arith.mulf %116, %96 : vector<8x128xf32>
    %126 = arith.mulf %110, %118 : vector<8x128xf32>
    %127 = arith.addf %125, %126 : vector<8x128xf32>
    %128 = math.tanh %127 : vector<8x128xf32>
    %129 = arith.mulf %124, %128 : vector<8x128xf32>
    %c4_i32 = arith.constant 4 : i32
    %130 = arith.index_cast %c4_i32 : i32 to index
    %c0_30 = arith.constant 0 : index
    %c0_31 = arith.constant 0 : index
    %131 = vector.load %arg2[%130, %c0_30, %c0_31] : memref<8x8x512xf32, #tpu.memory_space<vmem>>, vector<1x8x512xf32>
    %132 = vector.shape_cast %131 : vector<1x8x512xf32> to vector<8x512xf32>
    %133 = arith.truncf %129 : vector<8x128xf32> to vector<8x128xbf16>
    %cst_32 = arith.constant dense<0.000000e+00> : vector<8x512xf32>
    %134 = tpu.matmul %133, %3, %cst_32 {dimension_numbers = #tpu.dot_dimension_numbers<[1], [0], [0], [1], [0, 0, 1, 1], [], []>} : vector<8x128xbf16>, vector<128x512xbf16>, vector<8x512xf32> -> vector<8x512xf32>
    %135 = arith.addf %132, %134 : vector<8x512xf32>
    %136 = vector.extract_strided_slice %135 {offsets = [0, 0], sizes = [8, 128], strides = [1, 1]} : vector<8x512xf32> to vector<8x128xf32>
    %137 = arith.negf %136 : vector<8x128xf32>
    %138 = math.exp %137 : vector<8x128xf32>
    %cst_33 = arith.constant 1.000000e+00 : f32
    %139 = vector.broadcast %cst_33 : f32 to vector<8x128xf32>
    %140 = arith.addf %139, %138 : vector<8x128xf32>
    %141 = arith.divf %139, %140 : vector<8x128xf32>
    %142 = vector.extract_strided_slice %135 {offsets = [0, 128], sizes = [8, 128], strides = [1, 1]} : vector<8x512xf32> to vector<8x128xf32>
    %143 = arith.negf %142 : vector<8x128xf32>
    %144 = math.exp %143 : vector<8x128xf32>
    %cst_34 = arith.constant 1.000000e+00 : f32
    %145 = vector.broadcast %cst_34 : f32 to vector<8x128xf32>
    %146 = arith.addf %145, %144 : vector<8x128xf32>
    %147 = arith.divf %145, %146 : vector<8x128xf32>
    %148 = vector.extract_strided_slice %135 {offsets = [0, 256], sizes = [8, 128], strides = [1, 1]} : vector<8x512xf32> to vector<8x128xf32>
    %149 = math.tanh %148 : vector<8x128xf32>
    %150 = vector.extract_strided_slice %135 {offsets = [0, 384], sizes = [8, 128], strides = [1, 1]} : vector<8x512xf32> to vector<8x128xf32>
    %151 = arith.negf %150 : vector<8x128xf32>
    %152 = math.exp %151 : vector<8x128xf32>
    %cst_35 = arith.constant 1.000000e+00 : f32
    %153 = vector.broadcast %cst_35 : f32 to vector<8x128xf32>
    %154 = arith.addf %153, %152 : vector<8x128xf32>
    %155 = arith.divf %153, %154 : vector<8x128xf32>
    %156 = arith.mulf %147, %127 : vector<8x128xf32>
    %157 = arith.mulf %141, %149 : vector<8x128xf32>
    %158 = arith.addf %156, %157 : vector<8x128xf32>
    %159 = math.tanh %158 : vector<8x128xf32>
    %160 = arith.mulf %155, %159 : vector<8x128xf32>
    %c5_i32 = arith.constant 5 : i32
    %161 = arith.index_cast %c5_i32 : i32 to index
    %c0_36 = arith.constant 0 : index
    %c0_37 = arith.constant 0 : index
    %162 = vector.load %arg2[%161, %c0_36, %c0_37] : memref<8x8x512xf32, #tpu.memory_space<vmem>>, vector<1x8x512xf32>
    %163 = vector.shape_cast %162 : vector<1x8x512xf32> to vector<8x512xf32>
    %164 = arith.truncf %160 : vector<8x128xf32> to vector<8x128xbf16>
    %cst_38 = arith.constant dense<0.000000e+00> : vector<8x512xf32>
    %165 = tpu.matmul %164, %3, %cst_38 {dimension_numbers = #tpu.dot_dimension_numbers<[1], [0], [0], [1], [0, 0, 1, 1], [], []>} : vector<8x128xbf16>, vector<128x512xbf16>, vector<8x512xf32> -> vector<8x512xf32>
    %166 = arith.addf %163, %165 : vector<8x512xf32>
    %167 = vector.extract_strided_slice %166 {offsets = [0, 0], sizes = [8, 128], strides = [1, 1]} : vector<8x512xf32> to vector<8x128xf32>
    %168 = arith.negf %167 : vector<8x128xf32>
    %169 = math.exp %168 : vector<8x128xf32>
    %cst_39 = arith.constant 1.000000e+00 : f32
    %170 = vector.broadcast %cst_39 : f32 to vector<8x128xf32>
    %171 = arith.addf %170, %169 : vector<8x128xf32>
    %172 = arith.divf %170, %171 : vector<8x128xf32>
    %173 = vector.extract_strided_slice %166 {offsets = [0, 128], sizes = [8, 128], strides = [1, 1]} : vector<8x512xf32> to vector<8x128xf32>
    %174 = arith.negf %173 : vector<8x128xf32>
    %175 = math.exp %174 : vector<8x128xf32>
    %cst_40 = arith.constant 1.000000e+00 : f32
    %176 = vector.broadcast %cst_40 : f32 to vector<8x128xf32>
    %177 = arith.addf %176, %175 : vector<8x128xf32>
    %178 = arith.divf %176, %177 : vector<8x128xf32>
    %179 = vector.extract_strided_slice %166 {offsets = [0, 256], sizes = [8, 128], strides = [1, 1]} : vector<8x512xf32> to vector<8x128xf32>
    %180 = math.tanh %179 : vector<8x128xf32>
    %181 = vector.extract_strided_slice %166 {offsets = [0, 384], sizes = [8, 128], strides = [1, 1]} : vector<8x512xf32> to vector<8x128xf32>
    %182 = arith.negf %181 : vector<8x128xf32>
    %183 = math.exp %182 : vector<8x128xf32>
    %cst_41 = arith.constant 1.000000e+00 : f32
    %184 = vector.broadcast %cst_41 : f32 to vector<8x128xf32>
    %185 = arith.addf %184, %183 : vector<8x128xf32>
    %186 = arith.divf %184, %185 : vector<8x128xf32>
    %187 = arith.mulf %178, %158 : vector<8x128xf32>
    %188 = arith.mulf %172, %180 : vector<8x128xf32>
    %189 = arith.addf %187, %188 : vector<8x128xf32>
    %190 = math.tanh %189 : vector<8x128xf32>
    %191 = arith.mulf %186, %190 : vector<8x128xf32>
    %c6_i32 = arith.constant 6 : i32
    %192 = arith.index_cast %c6_i32 : i32 to index
    %c0_42 = arith.constant 0 : index
    %c0_43 = arith.constant 0 : index
    %193 = vector.load %arg2[%192, %c0_42, %c0_43] : memref<8x8x512xf32, #tpu.memory_space<vmem>>, vector<1x8x512xf32>
    %194 = vector.shape_cast %193 : vector<1x8x512xf32> to vector<8x512xf32>
    %195 = arith.truncf %191 : vector<8x128xf32> to vector<8x128xbf16>
    %cst_44 = arith.constant dense<0.000000e+00> : vector<8x512xf32>
    %196 = tpu.matmul %195, %3, %cst_44 {dimension_numbers = #tpu.dot_dimension_numbers<[1], [0], [0], [1], [0, 0, 1, 1], [], []>} : vector<8x128xbf16>, vector<128x512xbf16>, vector<8x512xf32> -> vector<8x512xf32>
    %197 = arith.addf %194, %196 : vector<8x512xf32>
    %198 = vector.extract_strided_slice %197 {offsets = [0, 0], sizes = [8, 128], strides = [1, 1]} : vector<8x512xf32> to vector<8x128xf32>
    %199 = arith.negf %198 : vector<8x128xf32>
    %200 = math.exp %199 : vector<8x128xf32>
    %cst_45 = arith.constant 1.000000e+00 : f32
    %201 = vector.broadcast %cst_45 : f32 to vector<8x128xf32>
    %202 = arith.addf %201, %200 : vector<8x128xf32>
    %203 = arith.divf %201, %202 : vector<8x128xf32>
    %204 = vector.extract_strided_slice %197 {offsets = [0, 128], sizes = [8, 128], strides = [1, 1]} : vector<8x512xf32> to vector<8x128xf32>
    %205 = arith.negf %204 : vector<8x128xf32>
    %206 = math.exp %205 : vector<8x128xf32>
    %cst_46 = arith.constant 1.000000e+00 : f32
    %207 = vector.broadcast %cst_46 : f32 to vector<8x128xf32>
    %208 = arith.addf %207, %206 : vector<8x128xf32>
    %209 = arith.divf %207, %208 : vector<8x128xf32>
    %210 = vector.extract_strided_slice %197 {offsets = [0, 256], sizes = [8, 128], strides = [1, 1]} : vector<8x512xf32> to vector<8x128xf32>
    %211 = math.tanh %210 : vector<8x128xf32>
    %212 = vector.extract_strided_slice %197 {offsets = [0, 384], sizes = [8, 128], strides = [1, 1]} : vector<8x512xf32> to vector<8x128xf32>
    %213 = arith.negf %212 : vector<8x128xf32>
    %214 = math.exp %213 : vector<8x128xf32>
    %cst_47 = arith.constant 1.000000e+00 : f32
    %215 = vector.broadcast %cst_47 : f32 to vector<8x128xf32>
    %216 = arith.addf %215, %214 : vector<8x128xf32>
    %217 = arith.divf %215, %216 : vector<8x128xf32>
    %218 = arith.mulf %209, %189 : vector<8x128xf32>
    %219 = arith.mulf %203, %211 : vector<8x128xf32>
    %220 = arith.addf %218, %219 : vector<8x128xf32>
    %221 = math.tanh %220 : vector<8x128xf32>
    %222 = arith.mulf %217, %221 : vector<8x128xf32>
    %c7_i32 = arith.constant 7 : i32
    %223 = arith.index_cast %c7_i32 : i32 to index
    %c0_48 = arith.constant 0 : index
    %c0_49 = arith.constant 0 : index
    %224 = vector.load %arg2[%223, %c0_48, %c0_49] : memref<8x8x512xf32, #tpu.memory_space<vmem>>, vector<1x8x512xf32>
    %225 = vector.shape_cast %224 : vector<1x8x512xf32> to vector<8x512xf32>
    %226 = arith.truncf %222 : vector<8x128xf32> to vector<8x128xbf16>
    %cst_50 = arith.constant dense<0.000000e+00> : vector<8x512xf32>
    %227 = tpu.matmul %226, %3, %cst_50 {dimension_numbers = #tpu.dot_dimension_numbers<[1], [0], [0], [1], [0, 0, 1, 1], [], []>} : vector<8x128xbf16>, vector<128x512xbf16>, vector<8x512xf32> -> vector<8x512xf32>
    %228 = arith.addf %225, %227 : vector<8x512xf32>
    %229 = vector.extract_strided_slice %228 {offsets = [0, 0], sizes = [8, 128], strides = [1, 1]} : vector<8x512xf32> to vector<8x128xf32>
    %230 = arith.negf %229 : vector<8x128xf32>
    %231 = math.exp %230 : vector<8x128xf32>
    %cst_51 = arith.constant 1.000000e+00 : f32
    %232 = vector.broadcast %cst_51 : f32 to vector<8x128xf32>
    %233 = arith.addf %232, %231 : vector<8x128xf32>
    %234 = arith.divf %232, %233 : vector<8x128xf32>
    %235 = vector.extract_strided_slice %228 {offsets = [0, 128], sizes = [8, 128], strides = [1, 1]} : vector<8x512xf32> to vector<8x128xf32>
    %236 = arith.negf %235 : vector<8x128xf32>
    %237 = math.exp %236 : vector<8x128xf32>
    %cst_52 = arith.constant 1.000000e+00 : f32
    %238 = vector.broadcast %cst_52 : f32 to vector<8x128xf32>
    %239 = arith.addf %238, %237 : vector<8x128xf32>
    %240 = arith.divf %238, %239 : vector<8x128xf32>
    %241 = vector.extract_strided_slice %228 {offsets = [0, 256], sizes = [8, 128], strides = [1, 1]} : vector<8x512xf32> to vector<8x128xf32>
    %242 = math.tanh %241 : vector<8x128xf32>
    %243 = vector.extract_strided_slice %228 {offsets = [0, 384], sizes = [8, 128], strides = [1, 1]} : vector<8x512xf32> to vector<8x128xf32>
    %244 = arith.negf %243 : vector<8x128xf32>
    %245 = math.exp %244 : vector<8x128xf32>
    %cst_53 = arith.constant 1.000000e+00 : f32
    %246 = vector.broadcast %cst_53 : f32 to vector<8x128xf32>
    %247 = arith.addf %246, %245 : vector<8x128xf32>
    %248 = arith.divf %246, %247 : vector<8x128xf32>
    %249 = arith.mulf %240, %220 : vector<8x128xf32>
    %250 = arith.mulf %234, %242 : vector<8x128xf32>
    %251 = arith.addf %249, %250 : vector<8x128xf32>
    %252 = math.tanh %251 : vector<8x128xf32>
    %253 = arith.mulf %248, %252 : vector<8x128xf32>
    %c8_i32 = arith.constant 8 : i32
    %c0_54 = arith.constant 0 : index
    %c0_55 = arith.constant 0 : index
    %254 = vector.load %arg7[%c0_54, %c0_55] : memref<8x128xf32, #tpu.memory_space<vmem>>, vector<8x128xf32>
    tpu.vector_store %arg7[%c0_54, %c0_55], %253 {strides = array<i32>} : memref<8x128xf32, #tpu.memory_space<vmem>>, vector<8x128xf32>,
    %c0_56 = arith.constant 0 : index
    %c0_57 = arith.constant 0 : index
    %255 = vector.load %arg8[%c0_56, %c0_57] : memref<8x128xf32, #tpu.memory_space<vmem>>, vector<8x128xf32>
    tpu.vector_store %arg8[%c0_56, %c0_57], %251 {strides = array<i32>} : memref<8x128xf32, #tpu.memory_space<vmem>>, vector<8x128xf32>,
    %c0_i32_58 = arith.constant 0 : i32
    %256 = arith.cmpi eq, %arg1, %c0_i32_58 : i32
    %257 = arith.extui %256 : i1 to i32
    %c0_i32_59 = arith.constant 0 : i32
    %258 = arith.cmpi ne, %257, %c0_i32_59 : i32
    scf.if %258 {
      %c0_60 = arith.constant 0 : index
      %c0_61 = arith.constant 0 : index
      %259 = vector.load %arg4[%c0_60, %c0_61] : memref<128x128xf32, #tpu.memory_space<vmem>>, vector<128x128xf32>
      %cst_62 = arith.constant dense<0.000000e+00> : vector<8x128xf32>
      %260 = tpu.matmul %253, %259, %cst_62 {dimension_numbers = #tpu.dot_dimension_numbers<[1], [0], [0], [1], [0, 0, 1, 1], [], []>} : vector<8x128xf32>, vector<128x128xf32>, vector<8x128xf32> -> vector<8x128xf32>
      %c0_63 = arith.constant 0 : index
      %c0_64 = arith.constant 0 : index
      %261 = vector.load %arg5[%c0_63, %c0_64] : memref<1x128xf32, #tpu.memory_space<vmem>>, vector<1x128xf32>
      %262 = vector.broadcast %261 : vector<1x128xf32> to vector<8x128xf32>
      %263 = arith.addf %260, %262 : vector<8x128xf32>
      %264 = arith.negf %263 : vector<8x128xf32>
      %265 = math.exp %264 : vector<8x128xf32>
      %cst_65 = arith.constant 1.000000e+00 : f32
      %266 = vector.broadcast %cst_65 : f32 to vector<8x128xf32>
      %267 = arith.addf %266, %265 : vector<8x128xf32>
      %268 = arith.divf %266, %267 : vector<8x128xf32>
      %c0_66 = arith.constant 0 : index
      %c0_67 = arith.constant 0 : index
      %269 = vector.load %arg6[%c0_66, %c0_67] : memref<8x128xf32, #tpu.memory_space<vmem>>, vector<8x128xf32>
      tpu.vector_store %arg6[%c0_66, %c0_67], %268 {strides = array<i32>} : memref<8x128xf32, #tpu.memory_space<vmem>>, vector<8x128xf32>,
    } else {
    }
    return
  }
  func.func @transform_0(%arg0: i32, %arg1: i32) -> (i32, i32, i32) {
    %c0_i32 = arith.constant 0 : i32
    %c0_i32_0 = arith.constant 0 : i32
    return %arg1, %arg0, %c0_i32 : i32, i32, i32
  }
  func.func @transform_1(%arg0: i32, %arg1: i32) -> (i32, i32) {
    %c0_i32 = arith.constant 0 : i32
    %c0_i32_0 = arith.constant 0 : i32
    %c0_i32_1 = arith.constant 0 : i32
    return %c0_i32, %c0_i32_0 : i32, i32
  }
  func.func @transform_2(%arg0: i32, %arg1: i32) -> (i32, i32) {
    %c0_i32 = arith.constant 0 : i32
    %c0_i32_0 = arith.constant 0 : i32
    %c0_i32_1 = arith.constant 0 : i32
    return %c0_i32, %c0_i32_0 : i32, i32
  }
  func.func @transform_3(%arg0: i32, %arg1: i32) -> (i32, i32) {
    %c0_i32 = arith.constant 0 : i32
    %c0_i32_0 = arith.constant 0 : i32
    %c0_i32_1 = arith.constant 0 : i32
    return %c0_i32, %c0_i32_0 : i32, i32
  }
  func.func @transform_4(%arg0: i32, %arg1: i32) -> (i32, i32) {
    %c0_i32 = arith.constant 0 : i32
    %c0_i32_0 = arith.constant 0 : i32
    return %arg0, %c0_i32 : i32, i32
  }
}

</mosaic_0001>

<llo_original>
// kernel: tpu_custom_call.1
$region0: #{tpu_custom_call.1}
  #allocation0 [shape = 'u32[]', space=smem, size = 0x4, offset = 0x4, fixed_abs, tag = 'smem constant byte address 0x4 - core index']
  #allocation1 [shape = 'u32[144,128]{1,0:T(1,128)}', space=vmem, size = 0x12000, scoped, tag = 'internal scratch']
  #allocation2 [shape = 'f32[8,128]{1,0:T(8,128)}', space=vmem, size = 0x1000, scoped, tag = 'scratch operand']
  #allocation3 [shape = 'f32[8,128]{1,0:T(8,128)}', space=vmem, size = 0x1000, scoped, tag = 'scratch operand']
  %s0 = inlined_call_operand.hbm [shape: f32[8,8,512], index: 0, kind: input, shape index: {}]
  %s1 = inlined_call_operand.hbm [shape: bf16[128,512], index: 1, kind: input, shape index: {}]
  %s2 = inlined_call_operand.hbm [shape: f32[128,128], index: 2, kind: input, shape index: {}]
  %s3 = inlined_call_operand.vmem [shape: f32[1,128], index: 3, kind: input, shape index: {}]
  %s4 = inlined_call_operand.hbm [shape: f32[8,128], index: 4, kind: output, shape index: {}]
  %s5 = sld [smem:[#allocation0]]
  $region46: #{tpu_custom_call.1} parent=0
    _
  %s7 = ssub.s32 1, %s5
  %s8 = scalar_select 0, %s7, %s5
  $region1: #{tpu_custom_call.1} parent=0
    #allocation4 [shape = 'u8[131072]{0}', space=vmem, size = 0x20000, scoped, tag = 'input window, operand 0, single buffered']
    #allocation5 [shape = 's32[1]{0}', space=sflag, size = 0x4, scoped, tag = 'scoped memory for tpu_custom_call.1']
    #allocation6 [shape = 's32[1]{0}', space=sflag, size = 0x4, scoped, tag = 'scoped memory for tpu_custom_call.1']
    #allocation7 [shape = 'u8[131072]{0}', space=vmem, size = 0x20000, scoped, tag = 'input window, operand 1, single buffered']
    #allocation8 [shape = 's32[1]{0}', space=sflag, size = 0x4, scoped, tag = 'scoped memory for tpu_custom_call.1']
    #allocation9 [shape = 'u8[65536]{0}', space=vmem, size = 0x10000, scoped, tag = 'input window, operand 2, single buffered']
    #allocation10 [shape = 'u8[4096]{0}', space=vmem, size = 0x1000, scoped, tag = 'output window, operand 0, single buffered']
    %9 = vsyncpa [#allocation5], 0
    %10 = vsyncpa [#allocation8], 0
    %11 = vsyncpa [#allocation6], 0
    // Predicated region
    $region2: #{tpu_custom_call.1} parent=1 // pred_check
      _
    $region3: #{tpu_custom_call.1} parent=1 // pred_check_branch
      %13 = sbr.rel (0) target = $region5
    $region4: #{tpu_custom_call.1} parent=1 // pred_region
      %s15 = ssub.s32 4096, 4096
      %16 = vsyncadd [#allocation5], %s15
      %s17 = sshll.u32 [#allocation4], 4
      %s18 = int_to_ptr.vmem [resolvable:$true] %s17
      %23 = dma.hbm_to_vmem [thread:$0]  %s0, 4096, %s18, [#allocation5], 512, 512, 32
    $region5: #{tpu_custom_call.1} parent=1 // pred_fallthru
      _
    // Predicated region
    $region6: #{tpu_custom_call.1} parent=1 // pred_check
      _
    $region7: #{tpu_custom_call.1} parent=1 // pred_check_branch
      %25 = sbr.rel (0) target = $region9
    $region8: #{tpu_custom_call.1} parent=1 // pred_region
      %s27 = ssub.s32 4096, 4096
      %28 = vsyncadd [#allocation8], %s27
      %s29 = sshll.u32 [#allocation7], 4
      %s30 = int_to_ptr.vmem [resolvable:$true] %s29
      %35 = dma.hbm_to_vmem [thread:$0]  %s1, 4096, %s30, [#allocation8], 256, 256, 16
    $region9: #{tpu_custom_call.1} parent=1 // pred_fallthru
      _
    // Predicated region
    $region10: #{tpu_custom_call.1} parent=1 // pred_check
      _
    $region11: #{tpu_custom_call.1} parent=1 // pred_check_branch
      %37 = sbr.rel (0) target = $region13
    $region12: #{tpu_custom_call.1} parent=1 // pred_region
      %s39 = ssub.s32 2048, 2048
      %40 = vsyncadd [#allocation8], %s39
      %s41 = sshll.u32 [#allocation9], 4
      %s42 = int_to_ptr.vmem [resolvable:$true] %s41
      %47 = dma.hbm_to_vmem [thread:$0]  %s2, 2048, %s42, [#allocation8], 128, 128, 8
    $region13: #{tpu_custom_call.1} parent=1 // pred_fallthru
      _
    // Predicated region
    $region14: #{tpu_custom_call.1} parent=1 // pred_check
      _
    $region15: #{tpu_custom_call.1} parent=1 // pred_check_branch
      %49 = sbr.rel (0) target = $region17
    $region16: #{tpu_custom_call.1} parent=1 // pred_region
      _
    $region17: #{tpu_custom_call.1} parent=1 // pred_fallthru
      _
    // Predicated region
    $region18: #{tpu_custom_call.1} parent=1 // pred_check
      _
    $region19: #{tpu_custom_call.1} parent=1 // pred_check_branch
      %51 = sbr.rel (0) target = $region21
    $region20: #{tpu_custom_call.1} parent=1 // pred_region
      %52 = dma.done [#allocation5], 4096
    $region21: #{tpu_custom_call.1} parent=1 // pred_fallthru
      _
    // Predicated region
    $region22: #{tpu_custom_call.1} parent=1 // pred_check
      _
    $region23: #{tpu_custom_call.1} parent=1 // pred_check_branch
      %54 = sbr.rel (0) target = $region25
    $region24: #{tpu_custom_call.1} parent=1 // pred_region
      %55 = dma.done [#allocation8], 4096
    $region25: #{tpu_custom_call.1} parent=1 // pred_fallthru
      _
    // Predicated region
    $region26: #{tpu_custom_call.1} parent=1 // pred_check
      _
    $region27: #{tpu_custom_call.1} parent=1 // pred_check_branch
      %57 = sbr.rel (0) target = $region29
    $region28: #{tpu_custom_call.1} parent=1 // pred_region
      %58 = dma.done [#allocation8], 2048
    $region29: #{tpu_custom_call.1} parent=1 // pred_fallthru
      _
    %p60 = scmp.eq.s32.totalorder 0, 0
    // Predicated region
    $region30: #{tpu_custom_call.1} parent=1 // pred_check
      %p61 = pneg %p60
    $region31: #{tpu_custom_call.1} parent=1 // pred_check_branch
      %63 = sbr.rel (%p61) target = $region33
    $region32: #{tpu_custom_call.1} parent=1 // pred_region
      %64 = vst [vmem:[#allocation2] sm:$0xff] 0.0
      %65 = vst [vmem:[#allocation3] sm:$0xff] 0.0
    $region33: #{tpu_custom_call.1} parent=1 // pred_fallthru
      _
    %v66 = vld [vmem:[#allocation7] sm:$0xff]
    %v67 = vld [vmem:[#allocation7 + $0x8] sm:$0xff]
    %v68 = vld [vmem:[#allocation7 + $0x10] sm:$0xff]
    %v69 = vld [vmem:[#allocation7 + $0x18] sm:$0xff]
    %v70 = vld [vmem:[#allocation7 + $0x20] sm:$0xff]
    %v71 = vld [vmem:[#allocation7 + $0x28] sm:$0xff]
    %v72 = vld [vmem:[#allocation7 + $0x30] sm:$0xff]
    %v73 = vld [vmem:[#allocation7 + $0x38] sm:$0xff]
    %v74 = vld [vmem:[#allocation7 + $0x40] sm:$0xff]
    %v75 = vld [vmem:[#allocation7 + $0x48] sm:$0xff]
    %v76 = vld [vmem:[#allocation7 + $0x50] sm:$0xff]
    %v77 = vld [vmem:[#allocation7 + $0x58] sm:$0xff]
    %v78 = vld [vmem:[#allocation7 + $0x60] sm:$0xff]
    %v79 = vld [vmem:[#allocation7 + $0x68] sm:$0xff]
    %v80 = vld [vmem:[#allocation7 + $0x70] sm:$0xff]
    %v81 = vld [vmem:[#allocation7 + $0x78] sm:$0xff]
    %v82 = vld [vmem:[#allocation7 + $0x80] sm:$0xff]
    %v83 = vld [vmem:[#allocation7 + $0x88] sm:$0xff]
    %v84 = vld [vmem:[#allocation7 + $0x90] sm:$0xff]
    %v85 = vld [vmem:[#allocation7 + $0x98] sm:$0xff]
    %v86 = vld [vmem:[#allocation7 + $0xa0] sm:$0xff]
    %v87 = vld [vmem:[#allocation7 + $0xa8] sm:$0xff]
    %v88 = vld [vmem:[#allocation7 + $0xb0] sm:$0xff]
    %v89 = vld [vmem:[#allocation7 + $0xb8] sm:$0xff]
    %v90 = vld [vmem:[#allocation7 + $0xc0] sm:$0xff]
    %v91 = vld [vmem:[#allocation7 + $0xc8] sm:$0xff]
    %v92 = vld [vmem:[#allocation7 + $0xd0] sm:$0xff]
    %v93 = vld [vmem:[#allocation7 + $0xd8] sm:$0xff]
    %v94 = vld [vmem:[#allocation7 + $0xe0] sm:$0xff]
    %v95 = vld [vmem:[#allocation7 + $0xe8] sm:$0xff]
    %v96 = vld [vmem:[#allocation7 + $0xf0] sm:$0xff]
    %v97 = vld [vmem:[#allocation7 + $0xf8] sm:$0xff]
    %v98 = vld [vmem:[#allocation2] sm:$0xff]
    %v99 = vld [vmem:[#allocation3] sm:$0xff]
    %v100 = vld [vmem:[#allocation4] sm:$0xff]
    %v101 = vld [vmem:[#allocation4 + $0x8] sm:$0xff]
    %v102 = vld [vmem:[#allocation4 + $0x10] sm:$0xff]
    %v103 = vld [vmem:[#allocation4 + $0x18] sm:$0xff]
    %v104 = vpack.c.bf16 %v98, %v98
    %v137 = vunpack.c.l.b16 %v66
    %v138 = vunpack.c.h.b16 %v66
    %v139 = vunpack.c.l.b16 %v67
    %v140 = vunpack.c.h.b16 %v67
    %v141 = vunpack.c.l.b16 %v68
    %v142 = vunpack.c.h.b16 %v68
    %v143 = vunpack.c.l.b16 %v69
    %v144 = vunpack.c.h.b16 %v69
    %v145 = vunpack.c.l.b16 %v70
    %v146 = vunpack.c.h.b16 %v70
    %v147 = vunpack.c.l.b16 %v71
    %v148 = vunpack.c.h.b16 %v71
    %v149 = vunpack.c.l.b16 %v72
    %v150 = vunpack.c.h.b16 %v72
    %v151 = vunpack.c.l.b16 %v73
    %v152 = vunpack.c.h.b16 %v73
    %v153 = vunpack.c.l.b16 %v74
    %v154 = vunpack.c.h.b16 %v74
    %v155 = vunpack.c.l.b16 %v75
    %v156 = vunpack.c.h.b16 %v75
    %v157 = vunpack.c.l.b16 %v76
    %v158 = vunpack.c.h.b16 %v76
    %v159 = vunpack.c.l.b16 %v77
    %v160 = vunpack.c.h.b16 %v77
    %v161 = vunpack.c.l.b16 %v78
    %v162 = vunpack.c.h.b16 %v78
    %v163 = vunpack.c.l.b16 %v79
    %v164 = vunpack.c.h.b16 %v79
    %v165 = vunpack.c.l.b16 %v80
    %v166 = vunpack.c.h.b16 %v80
    %v167 = vunpack.c.l.b16 %v81
    %v168 = vunpack.c.h.b16 %v81
    %v169 = vunpack.c.l.b16 %v82
    %v170 = vunpack.c.h.b16 %v82
    %v171 = vunpack.c.l.b16 %v83
    %v172 = vunpack.c.h.b16 %v83
    %v173 = vunpack.c.l.b16 %v84
    %v174 = vunpack.c.h.b16 %v84
    %v175 = vunpack.c.l.b16 %v85
    %v176 = vunpack.c.h.b16 %v85
    %v177 = vunpack.c.l.b16 %v86
    %v178 = vunpack.c.h.b16 %v86
    %v179 = vunpack.c.l.b16 %v87
    %v180 = vunpack.c.h.b16 %v87
    %v181 = vunpack.c.l.b16 %v88
    %v182 = vunpack.c.h.b16 %v88
    %v183 = vunpack.c.l.b16 %v89
    %v184 = vunpack.c.h.b16 %v89
    %v185 = vunpack.c.l.b16 %v90
    %v186 = vunpack.c.h.b16 %v90
    %v187 = vunpack.c.l.b16 %v91
    %v188 = vunpack.c.h.b16 %v91
    %v189 = vunpack.c.l.b16 %v92
    %v190 = vunpack.c.h.b16 %v92
    %v191 = vunpack.c.l.b16 %v93
    %v192 = vunpack.c.h.b16 %v93
    %v193 = vunpack.c.l.b16 %v94
    %v194 = vunpack.c.h.b16 %v94
    %v195 = vunpack.c.l.b16 %v95
    %v196 = vunpack.c.h.b16 %v95
    %v197 = vunpack.c.l.b16 %v96
    %v198 = vunpack.c.h.b16 %v96
    %v199 = vunpack.c.l.b16 %v97
    %v200 = vunpack.c.h.b16 %v97
    %v201 = vpack.c.b16 %v141, %v137
    %v202 = vpack.c.b16 %v142, %v138
    %v203 = vpack.c.b16 %v143, %v139
    %v204 = vpack.c.b16 %v144, %v140
    %v205 = vpack.c.b16 %v149, %v145
    %v206 = vpack.c.b16 %v150, %v146
    %v207 = vpack.c.b16 %v151, %v147
    %v208 = vpack.c.b16 %v152, %v148
    %v209 = vpack.c.b16 %v157, %v153
    %v210 = vpack.c.b16 %v158, %v154
    %v211 = vpack.c.b16 %v159, %v155
    %v212 = vpack.c.b16 %v160, %v156
    %v213 = vpack.c.b16 %v165, %v161
    %v214 = vpack.c.b16 %v166, %v162
    %v215 = vpack.c.b16 %v167, %v163
    %v216 = vpack.c.b16 %v168, %v164
    %v217 = vpack.c.b16 %v173, %v169
    %v218 = vpack.c.b16 %v174, %v170
    %v219 = vpack.c.b16 %v175, %v171
    %v220 = vpack.c.b16 %v176, %v172
    %v221 = vpack.c.b16 %v181, %v177
    %v222 = vpack.c.b16 %v182, %v178
    %v223 = vpack.c.b16 %v183, %v179
    %v224 = vpack.c.b16 %v184, %v180
    %v225 = vpack.c.b16 %v189, %v185
    %v226 = vpack.c.b16 %v190, %v186
    %v227 = vpack.c.b16 %v191, %v187
    %v228 = vpack.c.b16 %v192, %v188
    %v229 = vpack.c.b16 %v197, %v193
    %v230 = vpack.c.b16 %v198, %v194
    %v231 = vpack.c.b16 %v199, %v195
    %v232 = vpack.c.b16 %v200, %v196
    %265 = vmatprep.subr.bf16.mxu0 %v202
    %266 = vmatpush1.bf16.msra.mxu0 %v201
    %267 = vmatprep.subr.bf16.mxu0 %v206
    %268 = vmatpush1.bf16.msra.mxu0 %v205
    %269 = vmatprep.subr.bf16.mxu0 %v210
    %270 = vmatpush1.bf16.msra.mxu0 %v209
    %271 = vmatprep.subr.bf16.mxu0 %v214
    %272 = vmatpush1.bf16.msra.mxu0 %v213
    %273 = vmatprep.subr.bf16.mxu0 %v218
    %274 = vmatpush1.bf16.msra.mxu0 %v217
    %275 = vmatprep.subr.bf16.mxu0 %v222
    %276 = vmatpush1.bf16.msra.mxu0 %v221
    %277 = vmatprep.subr.bf16.mxu0 %v226
    %278 = vmatpush1.bf16.msra.mxu0 %v225
    %279 = vmatprep.subr.bf16.mxu0 %v230
    %280 = vmatpush1.bf16.msra.mxu0 %v229
    %281 = vmatprep.subr.bf16.mxu0 0
    %282 = vmatpush1.bf16.msra.mxu0 0
    %283 = vmatprep.subr.bf16.mxu0 0
    %284 = vmatpush1.bf16.msra.mxu0 0
    %285 = vmatprep.subr.bf16.mxu0 0
    %286 = vmatpush1.bf16.msra.mxu0 0
    %287 = vmatprep.subr.bf16.mxu0 0
    %288 = vmatpush1.bf16.msra.mxu0 0
    %289 = vmatprep.subr.bf16.mxu0 0
    %290 = vmatpush1.bf16.msra.mxu0 0
    %291 = vmatprep.subr.bf16.mxu0 0
    %292 = vmatpush1.bf16.msra.mxu0 0
    %293 = vmatprep.subr.bf16.mxu0 0
    %294 = vmatpush1.bf16.msra.mxu0 0
    %295 = vmatprep.subr.bf16.mxu0 0
    %296 = vmatpush1.bf16.msra.mxu0 0
    %297 = vmatprep.mubr.bf16.mxu0 0
    %298 = vmatmul.mubr.bf16.gmra.mrb[0].mxu0 %v104
    %v299 = vpop.f32.mrb[0].mxu0
    %v300 = vadd.f32 0.0, %v299
    %v301 = vpop.f32.mrb[0].mxu0
    %v302 = vadd.f32 0.0, %v301
    %v303 = vpop.f32.mrb[0].mxu0
    %v304 = vpop.f32.mrb[0].mxu0
    %305 = vdwg.mxu0
    %306 = vmatprep.subr.bf16.mxu0 %v204
    %307 = vmatpush1.bf16.msra.mxu0 %v203
    %308 = vmatprep.subr.bf16.mxu0 %v208
    %309 = vmatpush1.bf16.msra.mxu0 %v207
    %310 = vmatprep.subr.bf16.mxu0 %v212
    %311 = vmatpush1.bf16.msra.mxu0 %v211
    %312 = vmatprep.subr.bf16.mxu0 %v216
    %313 = vmatpush1.bf16.msra.mxu0 %v215
    %314 = vmatprep.subr.bf16.mxu0 %v220
    %315 = vmatpush1.bf16.msra.mxu0 %v219
    %316 = vmatprep.subr.bf16.mxu0 %v224
    %317 = vmatpush1.bf16.msra.mxu0 %v223
    %318 = vmatprep.subr.bf16.mxu0 %v228
    %319 = vmatpush1.bf16.msra.mxu0 %v227
    %320 = vmatprep.subr.bf16.mxu0 %v232
    %321 = vmatpush1.bf16.msra.mxu0 %v231
    %322 = vmatprep.subr.bf16.mxu0 0
    %323 = vmatpush1.bf16.msra.mxu0 0
    %324 = vmatprep.subr.bf16.mxu0 0
    %325 = vmatpush1.bf16.msra.mxu0 0
    %326 = vmatprep.subr.bf16.mxu0 0
    %327 = vmatpush1.bf16.msra.mxu0 0
    %328 = vmatprep.subr.bf16.mxu0 0
    %329 = vmatpush1.bf16.msra.mxu0 0
    %330 = vmatprep.subr.bf16.mxu0 0
    %331 = vmatpush1.bf16.msra.mxu0 0
    %332 = vmatprep.subr.bf16.mxu0 0
    %333 = vmatpush1.bf16.msra.mxu0 0
    %334 = vmatprep.subr.bf16.mxu0 0
    %335 = vmatpush1.bf16.msra.mxu0 0
    %336 = vmatprep.subr.bf16.mxu0 0
    %337 = vmatpush1.bf16.msra.mxu0 0
    %338 = vmatprep.mubr.bf16.mxu0 0
    %339 = vmatmul.mubr.bf16.gmra.mrb[0].mxu0 %v104
    %v340 = vpop.f32.mrb[0].mxu0
    %v341 = vadd.f32 0.0, %v340
    %v342 = vpop.f32.mrb[0].mxu0
    %v343 = vadd.f32 0.0, %v342
    %v344 = vpop.f32.mrb[0].mxu0
    %v345 = vpop.f32.mrb[0].mxu0
    %346 = vdwg.mxu0
    %v347 = vadd.f32 %v100, %v300
    %v348 = vadd.f32 %v101, %v302
    %v349 = vadd.f32 %v102, %v341
    %v350 = vadd.f32 %v103, %v343
    %v351 = vxor.u32 %v347, 2147483648
    %v352 = vmul.f32 %v351, 1.442695
    %v353 = vpow.pop %v352
    %v354 = vadd.f32 %v353, 1.0
    %v355 = vrcp.pop %v354
    %v356 = vmul.f32 1.0, %v355
    %v357 = vxor.u32 %v348, 2147483648
    %v358 = vmul.f32 %v357, 1.442695
    %v359 = vpow.pop %v358
    %v360 = vadd.f32 %v359, 1.0
    %v361 = vrcp.pop %v360
    %v362 = vmul.f32 1.0, %v361
    %v363 = vtanh.pop %v349
    %v364 = vxor.u32 %v350, 2147483648
    %v365 = vmul.f32 %v364, 1.442695
    %v366 = vpow.pop %v365
    %v367 = vadd.f32 %v366, 1.0
    %v368 = vrcp.pop %v367
    %v369 = vmul.f32 1.0, %v368
    %v370 = vmul.f32 %v362, %v99
    %v371 = vmul.f32 %v356, %v363
    %v372 = vadd.f32 %v370, %v371
    %v373 = vtanh.pop %v372
    %v374 = vmul.f32 %v369, %v373
    %s375 = scalar_lea.vmem [#allocation4], 32
    %v376 = vld [vmem:[%s375] sm:$0xff]
    %v377 = vld [vmem:[%s375 + $0x8] sm:$0xff]
    %v378 = vld [vmem:[%s375 + $0x10] sm:$0xff]
    %v379 = vld [vmem:[%s375 + $0x18] sm:$0xff]
    %v380 = vpack.c.bf16 %v374, %v374
    %381 = vmatprep.subr.bf16.mxu0 %v202
    %382 = vmatpush1.bf16.msra.mxu0 %v201
    %383 = vmatprep.subr.bf16.mxu0 %v206
    %384 = vmatpush1.bf16.msra.mxu0 %v205
    %385 = vmatprep.subr.bf16.mxu0 %v210
    %386 = vmatpush1.bf16.msra.mxu0 %v209
    %387 = vmatprep.subr.bf16.mxu0 %v214
    %388 = vmatpush1.bf16.msra.mxu0 %v213
    %389 = vmatprep.subr.bf16.mxu0 %v218
    %390 = vmatpush1.bf16.msra.mxu0 %v217
    %391 = vmatprep.subr.bf16.mxu0 %v222
    %392 = vmatpush1.bf16.msra.mxu0 %v221
    %393 = vmatprep.subr.bf16.mxu0 %v226
    %394 = vmatpush1.bf16.msra.mxu0 %v225
    %395 = vmatprep.subr.bf16.mxu0 %v230
    %396 = vmatpush1.bf16.msra.mxu0 %v229
    %397 = vmatprep.subr.bf16.mxu0 0
    %398 = vmatpush1.bf16.msra.mxu0 0
    %399 = vmatprep.subr.bf16.mxu0 0
    %400 = vmatpush1.bf16.msra.mxu0 0
    %401 = vmatprep.subr.bf16.mxu0 0
    %402 = vmatpush1.bf16.msra.mxu0 0
    %403 = vmatprep.subr.bf16.mxu0 0
    %404 = vmatpush1.bf16.msra.mxu0 0
    %405 = vmatprep.subr.bf16.mxu0 0
    %406 = vmatpush1.bf16.msra.mxu0 0
    %407 = vmatprep.subr.bf16.mxu0 0
    %408 = vmatpush1.bf16.msra.mxu0 0
    %409 = vmatprep.subr.bf16.mxu0 0
    %410 = vmatpush1.bf16.msra.mxu0 0
    %411 = vmatprep.subr.bf16.mxu0 0
    %412 = vmatpush1.bf16.msra.mxu0 0
    %413 = vmatprep.mubr.bf16.mxu0 0
    %414 = vmatmul.mubr.bf16.gmra.mrb[0].mxu0 %v380
    %v415 = vpop.f32.mrb[0].mxu0
    %v416 = vadd.f32 0.0, %v415
    %v417 = vpop.f32.mrb[0].mxu0
    %v418 = vadd.f32 0.0, %v417
    %v419 = vpop.f32.mrb[0].mxu0
    %v420 = vpop.f32.mrb[0].mxu0
    %421 = vdwg.mxu0
    %422 = vmatprep.subr.bf16.mxu0 %v204
    %423 = vmatpush1.bf16.msra.mxu0 %v203
    %424 = vmatprep.subr.bf16.mxu0 %v208
    %425 = vmatpush1.bf16.msra.mxu0 %v207
    %426 = vmatprep.subr.bf16.mxu0 %v212
    %427 = vmatpush1.bf16.msra.mxu0 %v211
    %428 = vmatprep.subr.bf16.mxu0 %v216
    %429 = vmatpush1.bf16.msra.mxu0 %v215
    %430 = vmatprep.subr.bf16.mxu0 %v220
    %431 = vmatpush1.bf16.msra.mxu0 %v219
    %432 = vmatprep.subr.bf16.mxu0 %v224
    %433 = vmatpush1.bf16.msra.mxu0 %v223
    %434 = vmatprep.subr.bf16.mxu0 %v228
    %435 = vmatpush1.bf16.msra.mxu0 %v227
    %436 = vmatprep.subr.bf16.mxu0 %v232
    %437 = vmatpush1.bf16.msra.mxu0 %v231
    %438 = vmatprep.subr.bf16.mxu0 0
    %439 = vmatpush1.bf16.msra.mxu0 0
    %440 = vmatprep.subr.bf16.mxu0 0
    %441 = vmatpush1.bf16.msra.mxu0 0
    %442 = vmatprep.subr.bf16.mxu0 0
    %443 = vmatpush1.bf16.msra.mxu0 0
    %444 = vmatprep.subr.bf16.mxu0 0
    %445 = vmatpush1.bf16.msra.mxu0 0
    %446 = vmatprep.subr.bf16.mxu0 0
    %447 = vmatpush1.bf16.msra.mxu0 0
    %448 = vmatprep.subr.bf16.mxu0 0
    %449 = vmatpush1.bf16.msra.mxu0 0
    %450 = vmatprep.subr.bf16.mxu0 0
    %451 = vmatpush1.bf16.msra.mxu0 0
    %452 = vmatprep.subr.bf16.mxu0 0
    %453 = vmatpush1.bf16.msra.mxu0 0
    %454 = vmatprep.mubr.bf16.mxu0 0
    %455 = vmatmul.mubr.bf16.gmra.mrb[0].mxu0 %v380
    %v456 = vpop.f32.mrb[0].mxu0
    %v457 = vadd.f32 0.0, %v456
    %v458 = vpop.f32.mrb[0].mxu0
    %v459 = vadd.f32 0.0, %v458
    %v460 = vpop.f32.mrb[0].mxu0
    %v461 = vpop.f32.mrb[0].mxu0
    %462 = vdwg.mxu0
    %v463 = vadd.f32 %v376, %v416
    %v464 = vadd.f32 %v377, %v418
    %v465 = vadd.f32 %v378, %v457
    %v466 = vadd.f32 %v379, %v459
    %v467 = vxor.u32 %v463, 2147483648
    %v468 = vmul.f32 %v467, 1.442695
    %v469 = vpow.pop %v468
    %v470 = vadd.f32 %v469, 1.0
    %v471 = vrcp.pop %v470
    %v472 = vmul.f32 1.0, %v471
    %v473 = vxor.u32 %v464, 2147483648
    %v474 = vmul.f32 %v473, 1.442695
    %v475 = vpow.pop %v474
    %v476 = vadd.f32 %v475, 1.0
    %v477 = vrcp.pop %v476
    %v478 = vmul.f32 1.0, %v477
    %v479 = vtanh.pop %v465
    %v480 = vxor.u32 %v466, 2147483648
    %v481 = vmul.f32 %v480, 1.442695
    %v482 = vpow.pop %v481
    %v483 = vadd.f32 %v482, 1.0
    %v484 = vrcp.pop %v483
    %v485 = vmul.f32 1.0, %v484
    %v486 = vmul.f32 %v478, %v372
    %v487 = vmul.f32 %v472, %v479
    %v488 = vadd.f32 %v486, %v487
    %v489 = vtanh.pop %v488
    %v490 = vmul.f32 %v485, %v489
    %s491 = scalar_lea.vmem [#allocation4], 64
    %v492 = vld [vmem:[%s491] sm:$0xff]
    %v493 = vld [vmem:[%s491 + $0x8] sm:$0xff]
    %v494 = vld [vmem:[%s491 + $0x10] sm:$0xff]
    %v495 = vld [vmem:[%s491 + $0x18] sm:$0xff]
    %v496 = vpack.c.bf16 %v490, %v490
    %497 = vmatprep.subr.bf16.mxu0 %v202
    %498 = vmatpush1.bf16.msra.mxu0 %v201
    %499 = vmatprep.subr.bf16.mxu0 %v206
    %500 = vmatpush1.bf16.msra.mxu0 %v205
    %501 = vmatprep.subr.bf16.mxu0 %v210
    %502 = vmatpush1.bf16.msra.mxu0 %v209
    %503 = vmatprep.subr.bf16.mxu0 %v214
    %504 = vmatpush1.bf16.msra.mxu0 %v213
    %505 = vmatprep.subr.bf16.mxu0 %v218
    %506 = vmatpush1.bf16.msra.mxu0 %v217
    %507 = vmatprep.subr.bf16.mxu0 %v222
    %508 = vmatpush1.bf16.msra.mxu0 %v221
    %509 = vmatprep.subr.bf16.mxu0 %v226
    %510 = vmatpush1.bf16.msra.mxu0 %v225
    %511 = vmatprep.subr.bf16.mxu0 %v230
    %512 = vmatpush1.bf16.msra.mxu0 %v229
    %513 = vmatprep.subr.bf16.mxu0 0
    %514 = vmatpush1.bf16.msra.mxu0 0
    %515 = vmatprep.subr.bf16.mxu0 0
    %516 = vmatpush1.bf16.msra.mxu0 0
    %517 = vmatprep.subr.bf16.mxu0 0
    %518 = vmatpush1.bf16.msra.mxu0 0
    %519 = vmatprep.subr.bf16.mxu0 0
    %520 = vmatpush1.bf16.msra.mxu0 0
    %521 = vmatprep.subr.bf16.mxu0 0
    %522 = vmatpush1.bf16.msra.mxu0 0
    %523 = vmatprep.subr.bf16.mxu0 0
    %524 = vmatpush1.bf16.msra.mxu0 0
    %525 = vmatprep.subr.bf16.mxu0 0
    %526 = vmatpush1.bf16.msra.mxu0 0
    %527 = vmatprep.subr.bf16.mxu0 0
    %528 = vmatpush1.bf16.msra.mxu0 0
    %529 = vmatprep.mubr.bf16.mxu0 0
    %530 = vmatmul.mubr.bf16.gmra.mrb[0].mxu0 %v496
    %v531 = vpop.f32.mrb[0].mxu0
    %v532 = vadd.f32 0.0, %v531
    %v533 = vpop.f32.mrb[0].mxu0
    %v534 = vadd.f32 0.0, %v533
    %v535 = vpop.f32.mrb[0].mxu0
    %v536 = vpop.f32.mrb[0].mxu0
    %537 = vdwg.mxu0
    %538 = vmatprep.subr.bf16.mxu0 %v204
    %539 = vmatpush1.bf16.msra.mxu0 %v203
    %540 = vmatprep.subr.bf16.mxu0 %v208
    %541 = vmatpush1.bf16.msra.mxu0 %v207
    %542 = vmatprep.subr.bf16.mxu0 %v212
    %543 = vmatpush1.bf16.msra.mxu0 %v211
    %544 = vmatprep.subr.bf16.mxu0 %v216
    %545 = vmatpush1.bf16.msra.mxu0 %v215
    %546 = vmatprep.subr.bf16.mxu0 %v220
    %547 = vmatpush1.bf16.msra.mxu0 %v219
    %548 = vmatprep.subr.bf16.mxu0 %v224
    %549 = vmatpush1.bf16.msra.mxu0 %v223
    %550 = vmatprep.subr.bf16.mxu0 %v228
    %551 = vmatpush1.bf16.msra.mxu0 %v227
    %552 = vmatprep.subr.bf16.mxu0 %v232
    %553 = vmatpush1.bf16.msra.mxu0 %v231
    %554 = vmatprep.subr.bf16.mxu0 0
    %555 = vmatpush1.bf16.msra.mxu0 0
    %556 = vmatprep.subr.bf16.mxu0 0
    %557 = vmatpush1.bf16.msra.mxu0 0
    %558 = vmatprep.subr.bf16.mxu0 0
    %559 = vmatpush1.bf16.msra.mxu0 0
    %560 = vmatprep.subr.bf16.mxu0 0
    %561 = vmatpush1.bf16.msra.mxu0 0
    %562 = vmatprep.subr.bf16.mxu0 0
    %563 = vmatpush1.bf16.msra.mxu0 0
    %564 = vmatprep.subr.bf16.mxu0 0
    %565 = vmatpush1.bf16.msra.mxu0 0
    %566 = vmatprep.subr.bf16.mxu0 0
    %567 = vmatpush1.bf16.msra.mxu0 0
    %568 = vmatprep.subr.bf16.mxu0 0
    %569 = vmatpush1.bf16.msra.mxu0 0
    %570 = vmatprep.mubr.bf16.mxu0 0
    %571 = vmatmul.mubr.bf16.gmra.mrb[0].mxu0 %v496
    %v572 = vpop.f32.mrb[0].mxu0
    %v573 = vadd.f32 0.0, %v572
    %v574 = vpop.f32.mrb[0].mxu0
    %v575 = vadd.f32 0.0, %v574
    %v576 = vpop.f32.mrb[0].mxu0
    %v577 = vpop.f32.mrb[0].mxu0
    %578 = vdwg.mxu0
    %v579 = vadd.f32 %v492, %v532
    %v580 = vadd.f32 %v493, %v534
    %v581 = vadd.f32 %v494, %v573
    %v582 = vadd.f32 %v495, %v575
    %v583 = vxor.u32 %v579, 2147483648
    %v584 = vmul.f32 %v583, 1.442695
    %v585 = vpow.pop %v584
    %v586 = vadd.f32 %v585, 1.0
    %v587 = vrcp.pop %v586
    %v588 = vmul.f32 1.0, %v587
    %v589 = vxor.u32 %v580, 2147483648
    %v590 = vmul.f32 %v589, 1.442695
    %v591 = vpow.pop %v590
    %v592 = vadd.f32 %v591, 1.0
    %v593 = vrcp.pop %v592
    %v594 = vmul.f32 1.0, %v593
    %v595 = vtanh.pop %v581
    %v596 = vxor.u32 %v582, 2147483648
    %v597 = vmul.f32 %v596, 1.442695
    %v598 = vpow.pop %v597
    %v599 = vadd.f32 %v598, 1.0
    %v600 = vrcp.pop %v599
    %v601 = vmul.f32 1.0, %v600
    %v602 = vmul.f32 %v594, %v488
    %v603 = vmul.f32 %v588, %v595
    %v604 = vadd.f32 %v602, %v603
    %v605 = vtanh.pop %v604
    %v606 = vmul.f32 %v601, %v605
    %s607 = scalar_lea.vmem [#allocation4], 96
    %v608 = vld [vmem:[%s607] sm:$0xff]
    %v609 = vld [vmem:[%s607 + $0x8] sm:$0xff]
    %v610 = vld [vmem:[%s607 + $0x10] sm:$0xff]
    %v611 = vld [vmem:[%s607 + $0x18] sm:$0xff]
    %v612 = vpack.c.bf16 %v606, %v606
    %613 = vmatprep.subr.bf16.mxu0 %v202
    %614 = vmatpush1.bf16.msra.mxu0 %v201
    %615 = vmatprep.subr.bf16.mxu0 %v206
    %616 = vmatpush1.bf16.msra.mxu0 %v205
    %617 = vmatprep.subr.bf16.mxu0 %v210
    %618 = vmatpush1.bf16.msra.mxu0 %v209
    %619 = vmatprep.subr.bf16.mxu0 %v214
    %620 = vmatpush1.bf16.msra.mxu0 %v213
    %621 = vmatprep.subr.bf16.mxu0 %v218
    %622 = vmatpush1.bf16.msra.mxu0 %v217
    %623 = vmatprep.subr.bf16.mxu0 %v222
    %624 = vmatpush1.bf16.msra.mxu0 %v221
    %625 = vmatprep.subr.bf16.mxu0 %v226
    %626 = vmatpush1.bf16.msra.mxu0 %v225
    %627 = vmatprep.subr.bf16.mxu0 %v230
    %628 = vmatpush1.bf16.msra.mxu0 %v229
    %629 = vmatprep.subr.bf16.mxu0 0
    %630 = vmatpush1.bf16.msra.mxu0 0
    %631 = vmatprep.subr.bf16.mxu0 0
    %632 = vmatpush1.bf16.msra.mxu0 0
    %633 = vmatprep.subr.bf16.mxu0 0
    %634 = vmatpush1.bf16.msra.mxu0 0
    %635 = vmatprep.subr.bf16.mxu0 0
    %636 = vmatpush1.bf16.msra.mxu0 0
    %637 = vmatprep.subr.bf16.mxu0 0
    %638 = vmatpush1.bf16.msra.mxu0 0
    %639 = vmatprep.subr.bf16.mxu0 0
    %640 = vmatpush1.bf16.msra.mxu0 0
    %641 = vmatprep.subr.bf16.mxu0 0
    %642 = vmatpush1.bf16.msra.mxu0 0
    %643 = vmatprep.subr.bf16.mxu0 0
    %644 = vmatpush1.bf16.msra.mxu0 0
    %645 = vmatprep.mubr.bf16.mxu0 0
    %646 = vmatmul.mubr.bf16.gmra.mrb[0].mxu0 %v612
    %v647 = vpop.f32.mrb[0].mxu0
    %v648 = vadd.f32 0.0, %v647
    %v649 = vpop.f32.mrb[0].mxu0
    %v650 = vadd.f32 0.0, %v649
    %v651 = vpop.f32.mrb[0].mxu0
    %v652 = vpop.f32.mrb[0].mxu0
    %653 = vdwg.mxu0
    %654 = vmatprep.subr.bf16.mxu0 %v204
    %655 = vmatpush1.bf16.msra.mxu0 %v203
    %656 = vmatprep.subr.bf16.mxu0 %v208
    %657 = vmatpush1.bf16.msra.mxu0 %v207
    %658 = vmatprep.subr.bf16.mxu0 %v212
    %659 = vmatpush1.bf16.msra.mxu0 %v211
    %660 = vmatprep.subr.bf16.mxu0 %v216
    %661 = vmatpush1.bf16.msra.mxu0 %v215
    %662 = vmatprep.subr.bf16.mxu0 %v220
    %663 = vmatpush1.bf16.msra.mxu0 %v219
    %664 = vmatprep.subr.bf16.mxu0 %v224
    %665 = vmatpush1.bf16.msra.mxu0 %v223
    %666 = vmatprep.subr.bf16.mxu0 %v228
    %667 = vmatpush1.bf16.msra.mxu0 %v227
    %668 = vmatprep.subr.bf16.mxu0 %v232
    %669 = vmatpush1.bf16.msra.mxu0 %v231
    %670 = vmatprep.subr.bf16.mxu0 0
    %671 = vmatpush1.bf16.msra.mxu0 0
    %672 = vmatprep.subr.bf16.mxu0 0
    %673 = vmatpush1.bf16.msra.mxu0 0
    %674 = vmatprep.subr.bf16.mxu0 0
    %675 = vmatpush1.bf16.msra.mxu0 0
    %676 = vmatprep.subr.bf16.mxu0 0
    %677 = vmatpush1.bf16.msra.mxu0 0
    %678 = vmatprep.subr.bf16.mxu0 0
    %679 = vmatpush1.bf16.msra.mxu0 0
    %680 = vmatprep.subr.bf16.mxu0 0
    %681 = vmatpush1.bf16.msra.mxu0 0
    %682 = vmatprep.subr.bf16.mxu0 0
    %683 = vmatpush1.bf16.msra.mxu0 0
    %684 = vmatprep.subr.bf16.mxu0 0
    %685 = vmatpush1.bf16.msra.mxu0 0
    %686 = vmatprep.mubr.bf16.mxu0 0
    %687 = vmatmul.mubr.bf16.gmra.mrb[0].mxu0 %v612
    %v688 = vpop.f32.mrb[0].mxu0
    %v689 = vadd.f32 0.0, %v688
    %v690 = vpop.f32.mrb[0].mxu0
    %v691 = vadd.f32 0.0, %v690
    %v692 = vpop.f32.mrb[0].mxu0
    %v693 = vpop.f32.mrb[0].mxu0
    %694 = vdwg.mxu0
    %v695 = vadd.f32 %v608, %v648
    %v696 = vadd.f32 %v609, %v650
    %v697 = vadd.f32 %v610, %v689
    %v698 = vadd.f32 %v611, %v691
    %v699 = vxor.u32 %v695, 2147483648
    %v700 = vmul.f32 %v699, 1.442695
    %v701 = vpow.pop %v700
    %v702 = vadd.f32 %v701, 1.0
    %v703 = vrcp.pop %v702
    %v704 = vmul.f32 1.0, %v703
    %v705 = vxor.u32 %v696, 2147483648
    %v706 = vmul.f32 %v705, 1.442695
    %v707 = vpow.pop %v706
    %v708 = vadd.f32 %v707, 1.0
    %v709 = vrcp.pop %v708
    %v710 = vmul.f32 1.0, %v709
    %v711 = vtanh.pop %v697
    %v712 = vxor.u32 %v698, 2147483648
    %v713 = vmul.f32 %v712, 1.442695
    %v714 = vpow.pop %v713
    %v715 = vadd.f32 %v714, 1.0
    %v716 = vrcp.pop %v715
    %v717 = vmul.f32 1.0, %v716
    %v718 = vmul.f32 %v710, %v604
    %v719 = vmul.f32 %v704, %v711
    %v720 = vadd.f32 %v718, %v719
    %v721 = vtanh.pop %v720
    %v722 = vmul.f32 %v717, %v721
    %s723 = scalar_lea.vmem [#allocation4], 128
    %v724 = vld [vmem:[%s723] sm:$0xff]
    %v725 = vld [vmem:[%s723 + $0x8] sm:$0xff]
    %v726 = vld [vmem:[%s723 + $0x10] sm:$0xff]
    %v727 = vld [vmem:[%s723 + $0x18] sm:$0xff]
    %v728 = vpack.c.bf16 %v722, %v722
    %729 = vmatprep.subr.bf16.mxu0 %v202
    %730 = vmatpush1.bf16.msra.mxu0 %v201
    %731 = vmatprep.subr.bf16.mxu0 %v206
    %732 = vmatpush1.bf16.msra.mxu0 %v205
    %733 = vmatprep.subr.bf16.mxu0 %v210
    %734 = vmatpush1.bf16.msra.mxu0 %v209
    %735 = vmatprep.subr.bf16.mxu0 %v214
    %736 = vmatpush1.bf16.msra.mxu0 %v213
    %737 = vmatprep.subr.bf16.mxu0 %v218
    %738 = vmatpush1.bf16.msra.mxu0 %v217
    %739 = vmatprep.subr.bf16.mxu0 %v222
    %740 = vmatpush1.bf16.msra.mxu0 %v221
    %741 = vmatprep.subr.bf16.mxu0 %v226
    %742 = vmatpush1.bf16.msra.mxu0 %v225
    %743 = vmatprep.subr.bf16.mxu0 %v230
    %744 = vmatpush1.bf16.msra.mxu0 %v229
    %745 = vmatprep.subr.bf16.mxu0 0
    %746 = vmatpush1.bf16.msra.mxu0 0
    %747 = vmatprep.subr.bf16.mxu0 0
    %748 = vmatpush1.bf16.msra.mxu0 0
    %749 = vmatprep.subr.bf16.mxu0 0
    %750 = vmatpush1.bf16.msra.mxu0 0
    %751 = vmatprep.subr.bf16.mxu0 0
    %752 = vmatpush1.bf16.msra.mxu0 0
    %753 = vmatprep.subr.bf16.mxu0 0
    %754 = vmatpush1.bf16.msra.mxu0 0
    %755 = vmatprep.subr.bf16.mxu0 0
    %756 = vmatpush1.bf16.msra.mxu0 0
    %757 = vmatprep.subr.bf16.mxu0 0
    %758 = vmatpush1.bf16.msra.mxu0 0
    %759 = vmatprep.subr.bf16.mxu0 0
    %760 = vmatpush1.bf16.msra.mxu0 0
    %761 = vmatprep.mubr.bf16.mxu0 0
    %762 = vmatmul.mubr.bf16.gmra.mrb[0].mxu0 %v728
    %v763 = vpop.f32.mrb[0].mxu0
    %v764 = vadd.f32 0.0, %v763
    %v765 = vpop.f32.mrb[0].mxu0
    %v766 = vadd.f32 0.0, %v765
    %v767 = vpop.f32.mrb[0].mxu0
    %v768 = vpop.f32.mrb[0].mxu0
    %769 = vdwg.mxu0
    %770 = vmatprep.subr.bf16.mxu0 %v204
    %771 = vmatpush1.bf16.msra.mxu0 %v203
    %772 = vmatprep.subr.bf16.mxu0 %v208
    %773 = vmatpush1.bf16.msra.mxu0 %v207
    %774 = vmatprep.subr.bf16.mxu0 %v212
    %775 = vmatpush1.bf16.msra.mxu0 %v211
    %776 = vmatprep.subr.bf16.mxu0 %v216
    %777 = vmatpush1.bf16.msra.mxu0 %v215
    %778 = vmatprep.subr.bf16.mxu0 %v220
    %779 = vmatpush1.bf16.msra.mxu0 %v219
    %780 = vmatprep.subr.bf16.mxu0 %v224
    %781 = vmatpush1.bf16.msra.mxu0 %v223
    %782 = vmatprep.subr.bf16.mxu0 %v228
    %783 = vmatpush1.bf16.msra.mxu0 %v227
    %784 = vmatprep.subr.bf16.mxu0 %v232
    %785 = vmatpush1.bf16.msra.mxu0 %v231
    %786 = vmatprep.subr.bf16.mxu0 0
    %787 = vmatpush1.bf16.msra.mxu0 0
    %788 = vmatprep.subr.bf16.mxu0 0
    %789 = vmatpush1.bf16.msra.mxu0 0
    %790 = vmatprep.subr.bf16.mxu0 0
    %791 = vmatpush1.bf16.msra.mxu0 0
    %792 = vmatprep.subr.bf16.mxu0 0
    %793 = vmatpush1.bf16.msra.mxu0 0
    %794 = vmatprep.subr.bf16.mxu0 0
    %795 = vmatpush1.bf16.msra.mxu0 0
    %796 = vmatprep.subr.bf16.mxu0 0
    %797 = vmatpush1.bf16.msra.mxu0 0
    %798 = vmatprep.subr.bf16.mxu0 0
    %799 = vmatpush1.bf16.msra.mxu0 0
    %800 = vmatprep.subr.bf16.mxu0 0
    %801 = vmatpush1.bf16.msra.mxu0 0
    %802 = vmatprep.mubr.bf16.mxu0 0
    %803 = vmatmul.mubr.bf16.gmra.mrb[0].mxu0 %v728
    %v804 = vpop.f32.mrb[0].mxu0
    %v805 = vadd.f32 0.0, %v804
    %v806 = vpop.f32.mrb[0].mxu0
    %v807 = vadd.f32 0.0, %v806
    %v808 = vpop.f32.mrb[0].mxu0
    %v809 = vpop.f32.mrb[0].mxu0
    %810 = vdwg.mxu0
    %v811 = vadd.f32 %v724, %v764
    %v812 = vadd.f32 %v725, %v766
    %v813 = vadd.f32 %v726, %v805
    %v814 = vadd.f32 %v727, %v807
    %v815 = vxor.u32 %v811, 2147483648
    %v816 = vmul.f32 %v815, 1.442695
    %v817 = vpow.pop %v816
    %v818 = vadd.f32 %v817, 1.0
    %v819 = vrcp.pop %v818
    %v820 = vmul.f32 1.0, %v819
    %v821 = vxor.u32 %v812, 2147483648
    %v822 = vmul.f32 %v821, 1.442695
    %v823 = vpow.pop %v822
    %v824 = vadd.f32 %v823, 1.0
    %v825 = vrcp.pop %v824
    %v826 = vmul.f32 1.0, %v825
    %v827 = vtanh.pop %v813
    %v828 = vxor.u32 %v814, 2147483648
    %v829 = vmul.f32 %v828, 1.442695
    %v830 = vpow.pop %v829
    %v831 = vadd.f32 %v830, 1.0
    %v832 = vrcp.pop %v831
    %v833 = vmul.f32 1.0, %v832
    %v834 = vmul.f32 %v826, %v720
    %v835 = vmul.f32 %v820, %v827
    %v836 = vadd.f32 %v834, %v835
    %v837 = vtanh.pop %v836
    %v838 = vmul.f32 %v833, %v837
    %s839 = scalar_lea.vmem [#allocation4], 160
    %v840 = vld [vmem:[%s839] sm:$0xff]
    %v841 = vld [vmem:[%s839 + $0x8] sm:$0xff]
    %v842 = vld [vmem:[%s839 + $0x10] sm:$0xff]
    %v843 = vld [vmem:[%s839 + $0x18] sm:$0xff]
    %v844 = vpack.c.bf16 %v838, %v838
    %845 = vmatprep.subr.bf16.mxu0 %v202
    %846 = vmatpush1.bf16.msra.mxu0 %v201
    %847 = vmatprep.subr.bf16.mxu0 %v206
    %848 = vmatpush1.bf16.msra.mxu0 %v205
    %849 = vmatprep.subr.bf16.mxu0 %v210
    %850 = vmatpush1.bf16.msra.mxu0 %v209
    %851 = vmatprep.subr.bf16.mxu0 %v214
    %852 = vmatpush1.bf16.msra.mxu0 %v213
    %853 = vmatprep.subr.bf16.mxu0 %v218
    %854 = vmatpush1.bf16.msra.mxu0 %v217
    %855 = vmatprep.subr.bf16.mxu0 %v222
    %856 = vmatpush1.bf16.msra.mxu0 %v221
    %857 = vmatprep.subr.bf16.mxu0 %v226
    %858 = vmatpush1.bf16.msra.mxu0 %v225
    %859 = vmatprep.subr.bf16.mxu0 %v230
    %860 = vmatpush1.bf16.msra.mxu0 %v229
    %861 = vmatprep.subr.bf16.mxu0 0
    %862 = vmatpush1.bf16.msra.mxu0 0
    %863 = vmatprep.subr.bf16.mxu0 0
    %864 = vmatpush1.bf16.msra.mxu0 0
    %865 = vmatprep.subr.bf16.mxu0 0
    %866 = vmatpush1.bf16.msra.mxu0 0
    %867 = vmatprep.subr.bf16.mxu0 0
    %868 = vmatpush1.bf16.msra.mxu0 0
    %869 = vmatprep.subr.bf16.mxu0 0
    %870 = vmatpush1.bf16.msra.mxu0 0
    %871 = vmatprep.subr.bf16.mxu0 0
    %872 = vmatpush1.bf16.msra.mxu0 0
    %873 = vmatprep.subr.bf16.mxu0 0
    %874 = vmatpush1.bf16.msra.mxu0 0
    %875 = vmatprep.subr.bf16.mxu0 0
    %876 = vmatpush1.bf16.msra.mxu0 0
    %877 = vmatprep.mubr.bf16.mxu0 0
    %878 = vmatmul.mubr.bf16.gmra.mrb[0].mxu0 %v844
    %v879 = vpop.f32.mrb[0].mxu0
    %v880 = vadd.f32 0.0, %v879
    %v881 = vpop.f32.mrb[0].mxu0
    %v882 = vadd.f32 0.0, %v881
    %v883 = vpop.f32.mrb[0].mxu0
    %v884 = vpop.f32.mrb[0].mxu0
    %885 = vdwg.mxu0
    %886 = vmatprep.subr.bf16.mxu0 %v204
    %887 = vmatpush1.bf16.msra.mxu0 %v203
    %888 = vmatprep.subr.bf16.mxu0 %v208
    %889 = vmatpush1.bf16.msra.mxu0 %v207
    %890 = vmatprep.subr.bf16.mxu0 %v212
    %891 = vmatpush1.bf16.msra.mxu0 %v211
    %892 = vmatprep.subr.bf16.mxu0 %v216
    %893 = vmatpush1.bf16.msra.mxu0 %v215
    %894 = vmatprep.subr.bf16.mxu0 %v220
    %895 = vmatpush1.bf16.msra.mxu0 %v219
    %896 = vmatprep.subr.bf16.mxu0 %v224
    %897 = vmatpush1.bf16.msra.mxu0 %v223
    %898 = vmatprep.subr.bf16.mxu0 %v228
    %899 = vmatpush1.bf16.msra.mxu0 %v227
    %900 = vmatprep.subr.bf16.mxu0 %v232
    %901 = vmatpush1.bf16.msra.mxu0 %v231
    %902 = vmatprep.subr.bf16.mxu0 0
    %903 = vmatpush1.bf16.msra.mxu0 0
    %904 = vmatprep.subr.bf16.mxu0 0
    %905 = vmatpush1.bf16.msra.mxu0 0
    %906 = vmatprep.subr.bf16.mxu0 0
    %907 = vmatpush1.bf16.msra.mxu0 0
    %908 = vmatprep.subr.bf16.mxu0 0
    %909 = vmatpush1.bf16.msra.mxu0 0
    %910 = vmatprep.subr.bf16.mxu0 0
    %911 = vmatpush1.bf16.msra.mxu0 0
    %912 = vmatprep.subr.bf16.mxu0 0
    %913 = vmatpush1.bf16.msra.mxu0 0
    %914 = vmatprep.subr.bf16.mxu0 0
    %915 = vmatpush1.bf16.msra.mxu0 0
    %916 = vmatprep.subr.bf16.mxu0 0
    %917 = vmatpush1.bf16.msra.mxu0 0
    %918 = vmatprep.mubr.bf16.mxu0 0
    %919 = vmatmul.mubr.bf16.gmra.mrb[0].mxu0 %v844
    %v920 = vpop.f32.mrb[0].mxu0
    %v921 = vadd.f32 0.0, %v920
    %v922 = vpop.f32.mrb[0].mxu0
    %v923 = vadd.f32 0.0, %v922
    %v924 = vpop.f32.mrb[0].mxu0
    %v925 = vpop.f32.mrb[0].mxu0
    %926 = vdwg.mxu0
    %v927 = vadd.f32 %v840, %v880
    %v928 = vadd.f32 %v841, %v882
    %v929 = vadd.f32 %v842, %v921
    %v930 = vadd.f32 %v843, %v923
    %v931 = vxor.u32 %v927, 2147483648
    %v932 = vmul.f32 %v931, 1.442695
    %v933 = vpow.pop %v932
    %v934 = vadd.f32 %v933, 1.0
    %v935 = vrcp.pop %v934
    %v936 = vmul.f32 1.0, %v935
    %v937 = vxor.u32 %v928, 2147483648
    %v938 = vmul.f32 %v937, 1.442695
    %v939 = vpow.pop %v938
    %v940 = vadd.f32 %v939, 1.0
    %v941 = vrcp.pop %v940
    %v942 = vmul.f32 1.0, %v941
    %v943 = vtanh.pop %v929
    %v944 = vxor.u32 %v930, 2147483648
    %v945 = vmul.f32 %v944, 1.442695
    %v946 = vpow.pop %v945
    %v947 = vadd.f32 %v946, 1.0
    %v948 = vrcp.pop %v947
    %v949 = vmul.f32 1.0, %v948
    %v950 = vmul.f32 %v942, %v836
    %v951 = vmul.f32 %v936, %v943
    %v952 = vadd.f32 %v950, %v951
    %v953 = vtanh.pop %v952
    %v954 = vmul.f32 %v949, %v953
    %s955 = scalar_lea.vmem [#allocation4], 192
    %v956 = vld [vmem:[%s955] sm:$0xff]
    %v957 = vld [vmem:[%s955 + $0x8] sm:$0xff]
    %v958 = vld [vmem:[%s955 + $0x10] sm:$0xff]
    %v959 = vld [vmem:[%s955 + $0x18] sm:$0xff]
    %v960 = vpack.c.bf16 %v954, %v954
    %961 = vmatprep.subr.bf16.mxu0 %v202
    %962 = vmatpush1.bf16.msra.mxu0 %v201
    %963 = vmatprep.subr.bf16.mxu0 %v206
    %964 = vmatpush1.bf16.msra.mxu0 %v205
    %965 = vmatprep.subr.bf16.mxu0 %v210
    %966 = vmatpush1.bf16.msra.mxu0 %v209
    %967 = vmatprep.subr.bf16.mxu0 %v214
    %968 = vmatpush1.bf16.msra.mxu0 %v213
    %969 = vmatprep.subr.bf16.mxu0 %v218
    %970 = vmatpush1.bf16.msra.mxu0 %v217
    %971 = vmatprep.subr.bf16.mxu0 %v222
    %972 = vmatpush1.bf16.msra.mxu0 %v221
    %973 = vmatprep.subr.bf16.mxu0 %v226
    %974 = vmatpush1.bf16.msra.mxu0 %v225
    %975 = vmatprep.subr.bf16.mxu0 %v230
    %976 = vmatpush1.bf16.msra.mxu0 %v229
    %977 = vmatprep.subr.bf16.mxu0 0
    %978 = vmatpush1.bf16.msra.mxu0 0
    %979 = vmatprep.subr.bf16.mxu0 0
    %980 = vmatpush1.bf16.msra.mxu0 0
    %981 = vmatprep.subr.bf16.mxu0 0
    %982 = vmatpush1.bf16.msra.mxu0 0
    %983 = vmatprep.subr.bf16.mxu0 0
    %984 = vmatpush1.bf16.msra.mxu0 0
    %985 = vmatprep.subr.bf16.mxu0 0
    %986 = vmatpush1.bf16.msra.mxu0 0
    %987 = vmatprep.subr.bf16.mxu0 0
    %988 = vmatpush1.bf16.msra.mxu0 0
    %989 = vmatprep.subr.bf16.mxu0 0
    %990 = vmatpush1.bf16.msra.mxu0 0
    %991 = vmatprep.subr.bf16.mxu0 0
    %992 = vmatpush1.bf16.msra.mxu0 0
    %993 = vmatprep.mubr.bf16.mxu0 0
    %994 = vmatmul.mubr.bf16.gmra.mrb[0].mxu0 %v960
    %v995 = vpop.f32.mrb[0].mxu0
    %v996 = vadd.f32 0.0, %v995
    %v997 = vpop.f32.mrb[0].mxu0
    %v998 = vadd.f32 0.0, %v997
    %v999 = vpop.f32.mrb[0].mxu0
    %v1000 = vpop.f32.mrb[0].mxu0
    %1001 = vdwg.mxu0
    %1002 = vmatprep.subr.bf16.mxu0 %v204
    %1003 = vmatpush1.bf16.msra.mxu0 %v203
    %1004 = vmatprep.subr.bf16.mxu0 %v208
    %1005 = vmatpush1.bf16.msra.mxu0 %v207
    %1006 = vmatprep.subr.bf16.mxu0 %v212
    %1007 = vmatpush1.bf16.msra.mxu0 %v211
    %1008 = vmatprep.subr.bf16.mxu0 %v216
    %1009 = vmatpush1.bf16.msra.mxu0 %v215
    %1010 = vmatprep.subr.bf16.mxu0 %v220
    %1011 = vmatpush1.bf16.msra.mxu0 %v219
    %1012 = vmatprep.subr.bf16.mxu0 %v224
    %1013 = vmatpush1.bf16.msra.mxu0 %v223
    %1014 = vmatprep.subr.bf16.mxu0 %v228
    %1015 = vmatpush1.bf16.msra.mxu0 %v227
    %1016 = vmatprep.subr.bf16.mxu0 %v232
    %1017 = vmatpush1.bf16.msra.mxu0 %v231
    %1018 = vmatprep.subr.bf16.mxu0 0
    %1019 = vmatpush1.bf16.msra.mxu0 0
    %1020 = vmatprep.subr.bf16.mxu0 0
    %1021 = vmatpush1.bf16.msra.mxu0 0
    %1022 = vmatprep.subr.bf16.mxu0 0
    %1023 = vmatpush1.bf16.msra.mxu0 0
    %1024 = vmatprep.subr.bf16.mxu0 0
    %1025 = vmatpush1.bf16.msra.mxu0 0
    %1026 = vmatprep.subr.bf16.mxu0 0
    %1027 = vmatpush1.bf16.msra.mxu0 0
    %1028 = vmatprep.subr.bf16.mxu0 0
    %1029 = vmatpush1.bf16.msra.mxu0 0
    %1030 = vmatprep.subr.bf16.mxu0 0
    %1031 = vmatpush1.bf16.msra.mxu0 0
    %1032 = vmatprep.subr.bf16.mxu0 0
    %1033 = vmatpush1.bf16.msra.mxu0 0
    %1034 = vmatprep.mubr.bf16.mxu0 0
    %1035 = vmatmul.mubr.bf16.gmra.mrb[0].mxu0 %v960
    %v1036 = vpop.f32.mrb[0].mxu0
    %v1037 = vadd.f32 0.0, %v1036
    %v1038 = vpop.f32.mrb[0].mxu0
    %v1039 = vadd.f32 0.0, %v1038
    %v1040 = vpop.f32.mrb[0].mxu0
    %v1041 = vpop.f32.mrb[0].mxu0
    %1042 = vdwg.mxu0
    %v1043 = vadd.f32 %v956, %v996
    %v1044 = vadd.f32 %v957, %v998
    %v1045 = vadd.f32 %v958, %v1037
    %v1046 = vadd.f32 %v959, %v1039
    %v1047 = vxor.u32 %v1043, 2147483648
    %v1048 = vmul.f32 %v1047, 1.442695
    %v1049 = vpow.pop %v1048
    %v1050 = vadd.f32 %v1049, 1.0
    %v1051 = vrcp.pop %v1050
    %v1052 = vmul.f32 1.0, %v1051
    %v1053 = vxor.u32 %v1044, 2147483648
    %v1054 = vmul.f32 %v1053, 1.442695
    %v1055 = vpow.pop %v1054
    %v1056 = vadd.f32 %v1055, 1.0
    %v1057 = vrcp.pop %v1056
    %v1058 = vmul.f32 1.0, %v1057
    %v1059 = vtanh.pop %v1045
    %v1060 = vxor.u32 %v1046, 2147483648
    %v1061 = vmul.f32 %v1060, 1.442695
    %v1062 = vpow.pop %v1061
    %v1063 = vadd.f32 %v1062, 1.0
    %v1064 = vrcp.pop %v1063
    %v1065 = vmul.f32 1.0, %v1064
    %v1066 = vmul.f32 %v1058, %v952
    %v1067 = vmul.f32 %v1052, %v1059
    %v1068 = vadd.f32 %v1066, %v1067
    %v1069 = vtanh.pop %v1068
    %v1070 = vmul.f32 %v1065, %v1069
    %s1071 = scalar_lea.vmem [#allocation4], 224
    %v1072 = vld [vmem:[%s1071] sm:$0xff]
    %v1073 = vld [vmem:[%s1071 + $0x8] sm:$0xff]
    %v1074 = vld [vmem:[%s1071 + $0x10] sm:$0xff]
    %v1075 = vld [vmem:[%s1071 + $0x18] sm:$0xff]
    %v1076 = vpack.c.bf16 %v1070, %v1070
    %1077 = vmatprep.subr.bf16.mxu0 %v202
    %1078 = vmatpush1.bf16.msra.mxu0 %v201
    %1079 = vmatprep.subr.bf16.mxu0 %v206
    %1080 = vmatpush1.bf16.msra.mxu0 %v205
    %1081 = vmatprep.subr.bf16.mxu0 %v210
    %1082 = vmatpush1.bf16.msra.mxu0 %v209
    %1083 = vmatprep.subr.bf16.mxu0 %v214
    %1084 = vmatpush1.bf16.msra.mxu0 %v213
    %1085 = vmatprep.subr.bf16.mxu0 %v218
    %1086 = vmatpush1.bf16.msra.mxu0 %v217
    %1087 = vmatprep.subr.bf16.mxu0 %v222
    %1088 = vmatpush1.bf16.msra.mxu0 %v221
    %1089 = vmatprep.subr.bf16.mxu0 %v226
    %1090 = vmatpush1.bf16.msra.mxu0 %v225
    %1091 = vmatprep.subr.bf16.mxu0 %v230
    %1092 = vmatpush1.bf16.msra.mxu0 %v229
    %1093 = vmatprep.subr.bf16.mxu0 0
    %1094 = vmatpush1.bf16.msra.mxu0 0
    %1095 = vmatprep.subr.bf16.mxu0 0
    %1096 = vmatpush1.bf16.msra.mxu0 0
    %1097 = vmatprep.subr.bf16.mxu0 0
    %1098 = vmatpush1.bf16.msra.mxu0 0
    %1099 = vmatprep.subr.bf16.mxu0 0
    %1100 = vmatpush1.bf16.msra.mxu0 0
    %1101 = vmatprep.subr.bf16.mxu0 0
    %1102 = vmatpush1.bf16.msra.mxu0 0
    %1103 = vmatprep.subr.bf16.mxu0 0
    %1104 = vmatpush1.bf16.msra.mxu0 0
    %1105 = vmatprep.subr.bf16.mxu0 0
    %1106 = vmatpush1.bf16.msra.mxu0 0
    %1107 = vmatprep.subr.bf16.mxu0 0
    %1108 = vmatpush1.bf16.msra.mxu0 0
    %1109 = vmatprep.mubr.bf16.mxu0 0
    %1110 = vmatmul.mubr.bf16.gmra.mrb[0].mxu0 %v1076
    %v1111 = vpop.f32.mrb[0].mxu0
    %v1112 = vadd.f32 0.0, %v1111
    %v1113 = vpop.f32.mrb[0].mxu0
    %v1114 = vadd.f32 0.0, %v1113
    %v1115 = vpop.f32.mrb[0].mxu0
    %v1116 = vpop.f32.mrb[0].mxu0
    %1117 = vdwg.mxu0
    %1118 = vmatprep.subr.bf16.mxu0 %v204
    %1119 = vmatpush1.bf16.msra.mxu0 %v203
    %1120 = vmatprep.subr.bf16.mxu0 %v208
    %1121 = vmatpush1.bf16.msra.mxu0 %v207
    %1122 = vmatprep.subr.bf16.mxu0 %v212
    %1123 = vmatpush1.bf16.msra.mxu0 %v211
    %1124 = vmatprep.subr.bf16.mxu0 %v216
    %1125 = vmatpush1.bf16.msra.mxu0 %v215
    %1126 = vmatprep.subr.bf16.mxu0 %v220
    %1127 = vmatpush1.bf16.msra.mxu0 %v219
    %1128 = vmatprep.subr.bf16.mxu0 %v224
    %1129 = vmatpush1.bf16.msra.mxu0 %v223
    %1130 = vmatprep.subr.bf16.mxu0 %v228
    %1131 = vmatpush1.bf16.msra.mxu0 %v227
    %1132 = vmatprep.subr.bf16.mxu0 %v232
    %1133 = vmatpush1.bf16.msra.mxu0 %v231
    %1134 = vmatprep.subr.bf16.mxu0 0
    %1135 = vmatpush1.bf16.msra.mxu0 0
    %1136 = vmatprep.subr.bf16.mxu0 0
    %1137 = vmatpush1.bf16.msra.mxu0 0
    %1138 = vmatprep.subr.bf16.mxu0 0
    %1139 = vmatpush1.bf16.msra.mxu0 0
    %1140 = vmatprep.subr.bf16.mxu0 0
    %1141 = vmatpush1.bf16.msra.mxu0 0
    %1142 = vmatprep.subr.bf16.mxu0 0
    %1143 = vmatpush1.bf16.msra.mxu0 0
    %1144 = vmatprep.subr.bf16.mxu0 0
    %1145 = vmatpush1.bf16.msra.mxu0 0
    %1146 = vmatprep.subr.bf16.mxu0 0
    %1147 = vmatpush1.bf16.msra.mxu0 0
    %1148 = vmatprep.subr.bf16.mxu0 0
    %1149 = vmatpush1.bf16.msra.mxu0 0
    %1150 = vmatprep.mubr.bf16.mxu0 0
    %1151 = vmatmul.mubr.bf16.gmra.mrb[0].mxu0 %v1076
    %v1152 = vpop.f32.mrb[0].mxu0
    %v1153 = vadd.f32 0.0, %v1152
    %v1154 = vpop.f32.mrb[0].mxu0
    %v1155 = vadd.f32 0.0, %v1154
    %v1156 = vpop.f32.mrb[0].mxu0
    %v1157 = vpop.f32.mrb[0].mxu0
    %1158 = vdwg.mxu0
    %v1159 = vadd.f32 %v1072, %v1112
    %v1160 = vadd.f32 %v1073, %v1114
    %v1161 = vadd.f32 %v1074, %v1153
    %v1162 = vadd.f32 %v1075, %v1155
    %v1163 = vxor.u32 %v1159, 2147483648
    %v1164 = vmul.f32 %v1163, 1.442695
    %v1165 = vpow.pop %v1164
    %v1166 = vadd.f32 %v1165, 1.0
    %v1167 = vrcp.pop %v1166
    %v1168 = vmul.f32 1.0, %v1167
    %v1169 = vxor.u32 %v1160, 2147483648
    %v1170 = vmul.f32 %v1169, 1.442695
    %v1171 = vpow.pop %v1170
    %v1172 = vadd.f32 %v1171, 1.0
    %v1173 = vrcp.pop %v1172
    %v1174 = vmul.f32 1.0, %v1173
    %v1175 = vtanh.pop %v1161
    %v1176 = vxor.u32 %v1162, 2147483648
    %v1177 = vmul.f32 %v1176, 1.442695
    %v1178 = vpow.pop %v1177
    %v1179 = vadd.f32 %v1178, 1.0
    %v1180 = vrcp.pop %v1179
    %v1181 = vmul.f32 1.0, %v1180
    %v1182 = vmul.f32 %v1174, %v1068
    %v1183 = vmul.f32 %v1168, %v1175
    %v1184 = vadd.f32 %v1182, %v1183
    %v1185 = vtanh.pop %v1184
    %v1186 = vmul.f32 %v1181, %v1185
    %1187 = vst [vmem:[#allocation2] sm:$0xff] %v1186
    %1188 = vst [vmem:[#allocation3] sm:$0xff] %v1184
    // Predicated region
    $region34: #{tpu_custom_call.1} parent=1 // pred_check
      %p1189 = pneg %p60
    $region35: #{tpu_custom_call.1} parent=1 // pred_check_branch
      %1191 = sbr.rel (%p1189) target = $region37
    $region36: #{tpu_custom_call.1} parent=1 // pred_region
      %v1192 = vld [vmem:[#allocation9] sm:$0xff]
      %v1193 = vld [vmem:[#allocation9 + $0x8] sm:$0xff]
      %v1194 = vld [vmem:[#allocation9 + $0x10] sm:$0xff]
      %v1195 = vld [vmem:[#allocation9 + $0x18] sm:$0xff]
      %v1196 = vld [vmem:[#allocation9 + $0x20] sm:$0xff]
      %v1197 = vld [vmem:[#allocation9 + $0x28] sm:$0xff]
      %v1198 = vld [vmem:[#allocation9 + $0x30] sm:$0xff]
      %v1199 = vld [vmem:[#allocation9 + $0x38] sm:$0xff]
      %v1200 = vld [vmem:[#allocation9 + $0x40] sm:$0xff]
      %v1201 = vld [vmem:[#allocation9 + $0x48] sm:$0xff]
      %v1202 = vld [vmem:[#allocation9 + $0x50] sm:$0xff]
      %v1203 = vld [vmem:[#allocation9 + $0x58] sm:$0xff]
      %v1204 = vld [vmem:[#allocation9 + $0x60] sm:$0xff]
      %v1205 = vld [vmem:[#allocation9 + $0x68] sm:$0xff]
      %v1206 = vld [vmem:[#allocation9 + $0x70] sm:$0xff]
      %v1207 = vld [vmem:[#allocation9 + $0x78] sm:$0xff]
      %v1208 = vld [vmem:[%s3] sm:$0x1]
      %v1210 = vlaneseq
      %v1211 = vshrl.u32 %v1210, 7
      %v1212 = vsub.s32 0, %v1211
      %v1213 = vrot.slane %v1208, %v1212
      %1215 = vmatprep.subr.mxu0 0.0
      %1216 = vmatpush1.msra.mxu0 %v1192
      %1217 = vmatprep.subr.mxu0 0.0
      %1218 = vmatpush1.msra.mxu0 %v1193
      %1219 = vmatprep.subr.mxu0 0.0
      %1220 = vmatpush1.msra.mxu0 %v1194
      %1221 = vmatprep.subr.mxu0 0.0
      %1222 = vmatpush1.msra.mxu0 %v1195
      %1223 = vmatprep.subr.mxu0 0.0
      %1224 = vmatpush1.msra.mxu0 %v1196
      %1225 = vmatprep.subr.mxu0 0.0
      %1226 = vmatpush1.msra.mxu0 %v1197
      %1227 = vmatprep.subr.mxu0 0.0
      %1228 = vmatpush1.msra.mxu0 %v1198
      %1229 = vmatprep.subr.mxu0 0.0
      %1230 = vmatpush1.msra.mxu0 %v1199
      %1231 = vmatprep.subr.mxu0 0.0
      %1232 = vmatpush1.msra.mxu0 %v1200
      %1233 = vmatprep.subr.mxu0 0.0
      %1234 = vmatpush1.msra.mxu0 %v1201
      %1235 = vmatprep.subr.mxu0 0.0
      %1236 = vmatpush1.msra.mxu0 %v1202
      %1237 = vmatprep.subr.mxu0 0.0
      %1238 = vmatpush1.msra.mxu0 %v1203
      %1239 = vmatprep.subr.mxu0 0.0
      %1240 = vmatpush1.msra.mxu0 %v1204
      %1241 = vmatprep.subr.mxu0 0.0
      %1242 = vmatpush1.msra.mxu0 %v1205
      %1243 = vmatprep.subr.mxu0 0.0
      %1244 = vmatpush1.msra.mxu0 %v1206
      %1245 = vmatprep.subr.mxu0 0.0
      %1246 = vmatpush1.msra.mxu0 %v1207
      %1247 = vmatprep.subr.mxu0 0.0
      %1248 = vmatpush1.msra.mxu0 0.0
      %1249 = vmatprep.subr.mxu0 0.0
      %1250 = vmatpush1.msra.mxu0 0.0
      %1251 = vmatprep.subr.mxu0 0.0
      %1252 = vmatpush1.msra.mxu0 0.0
      %1253 = vmatprep.subr.mxu0 0.0
      %1254 = vmatpush1.msra.mxu0 0.0
      %1255 = vmatprep.subr.mxu0 0.0
      %1256 = vmatpush1.msra.mxu0 0.0
      %1257 = vmatprep.subr.mxu0 0.0
      %1258 = vmatpush1.msra.mxu0 0.0
      %1259 = vmatprep.subr.mxu0 0.0
      %1260 = vmatpush1.msra.mxu0 0.0
      %1261 = vmatprep.subr.mxu0 0.0
      %1262 = vmatpush1.msra.mxu0 0.0
      %1263 = vmatprep.subr.mxu0 0.0
      %1264 = vmatpush1.msra.mxu0 0.0
      %1265 = vmatprep.subr.mxu0 0.0
      %1266 = vmatpush1.msra.mxu0 0.0
      %1267 = vmatprep.subr.mxu0 0.0
      %1268 = vmatpush1.msra.mxu0 0.0
      %1269 = vmatprep.subr.mxu0 0.0
      %1270 = vmatpush1.msra.mxu0 0.0
      %1271 = vmatprep.subr.mxu0 0.0
      %1272 = vmatpush1.msra.mxu0 0.0
      %1273 = vmatprep.subr.mxu0 0.0
      %1274 = vmatpush1.msra.mxu0 0.0
      %1275 = vmatprep.subr.mxu0 0.0
      %1276 = vmatpush1.msra.mxu0 0.0
      %1277 = vmatprep.subr.mxu0 0.0
      %1278 = vmatpush1.msra.mxu0 0.0
      %1279 = vmatprep.mubr.f32.mxu0 0.0
      %1280 = vmatmul.mubr.f32.gmra.mrb[0].mxu0 %v1186
      %v1281 = vpop.f32.mrb[0].mxu0
      %v1282 = vadd.f32 %v1213, %v1281
      %v1283 = vpop.f32.mrb[0].mxu0
      %1284 = vdwg.mxu0
      %v1285 = vxor.u32 %v1282, 2147483648
      %v1286 = vmul.f32 %v1285, 1.442695
      %v1287 = vpow.pop %v1286
      %v1288 = vadd.f32 %v1287, 1.0
      %v1289 = vrcp.pop %v1288
      %v1290 = vmul.f32 1.0, %v1289
      %1291 = vst [vmem:[#allocation10] sm:$0xff] %v1290
    $region37: #{tpu_custom_call.1} parent=1 // pred_fallthru
      _
    // Predicated region
    $region38: #{tpu_custom_call.1} parent=1 // pred_check
      _
    $region39: #{tpu_custom_call.1} parent=1 // pred_check_branch
      %1293 = sbr.rel (0) target = $region41
    $region40: #{tpu_custom_call.1} parent=1 // pred_region
      %s1295 = ssub.s32 128, 128
      %1296 = vsyncadd [#allocation6], %s1295
      %s1298 = sshll.u32 [#allocation10], 4
      %s1299 = int_to_ptr.vmem [resolvable:$true] %s1298
      %1301 = dma.vmem_to_hbm [thread:$0]  %s1299, 128, %s4, [#allocation6]
    $region41: #{tpu_custom_call.1} parent=1 // pred_fallthru
      _
    // Predicated region
    $region42: #{tpu_custom_call.1} parent=1 // pred_check
      _
    $region43: #{tpu_custom_call.1} parent=1 // pred_check_branch
      %1303 = sbr.rel (0) target = $region45
    $region44: #{tpu_custom_call.1} parent=1 // pred_region
      %1304 = dma.done [#allocation6], 128
    $region45: #{tpu_custom_call.1} parent=1 // pred_fallthru
      _
    %1305 = vsyncpa [#allocation5], 1
    %1306 = vsyncpa [#allocation8], 1
    %1307 = vsyncpa [#allocation6], 1

</llo_original>
